<compile_context>
chip_gen: v5e
topology: v5e:2x2
jax: 0.10.0
libtpu: 0.0.40
codegen_flags: <defaults>
</compile_context>

<pallas_src>
import jax
import jax.numpy as jnp
from jax.experimental import pallas as pl
from jax.experimental.pallas import tpu as pltpu


def _linear_relu_kernel(x_ref, w_ref, b_ref, o_ref):
    """One (B, tn) output slab: out = relu(x @ w + b), f32 accumulation on MXU."""
    acc = jnp.dot(x_ref[...], w_ref[...], preferred_element_type=jnp.float32)
    o_ref[...] = jnp.maximum(acc + b_ref[...], 0.0).astype(o_ref.dtype)


def make_contrastive_transform(weight, bias, *, tn=256, param_dtype=jnp.bfloat16):
    """Build the forward fn for ContrastiveTransform.

    weight: (512, 2048) in PyTorch nn.Linear layout (out_features, in_features)
    bias:   (512,)

    The weight transpose + dtype cast happen HERE, exactly once (init time),
    so the per-call hot path only streams the already-prepared weight.
    Returns forward(features: (B, 2048) f32) -> (B, 512) f32.
    """
    OUT, IN = weight.shape
    assert bias.shape == (OUT,)
    assert OUT % tn == 0 and tn % 128 == 0

    w_t = jnp.asarray(weight).T.astype(param_dtype)          # (2048, 512), one-time
    b2d = jnp.asarray(bias).reshape(1, OUT).astype(jnp.float32)

    def forward(features):
        M, K = features.shape
        assert K == IN

        # Tiny (64 KiB -> 32 KiB) cast; matches the weight's streaming dtype.
        x = features.astype(w_t.dtype)

        bytes_accessed = (
            w_t.size * w_t.dtype.itemsize      # dominant: the weight stream
            + x.size * x.dtype.itemsize
            + b2d.size * 4
            + M * OUT * 4                      # f32 output
        )

        return pl.pallas_call(
            _linear_relu_kernel,
            out_shape=jax.ShapeDtypeStruct((M, OUT), jnp.float32),
            grid_spec=pltpu.PrefetchScalarGridSpec(
                num_scalar_prefetch=0,
                grid=(OUT // tn,),                              # 512/256 = 2 steps
                in_specs=[
                    pl.BlockSpec((M, K), lambda j: (0, 0)),     # full activations, resident
                    pl.BlockSpec((K, tn), lambda j: (0, j)),    # weight slice
                    pl.BlockSpec((1, tn), lambda j: (0, j)),    # bias slice
                ],
                out_specs=pl.BlockSpec((M, tn), lambda j: (0, j)),
            ),
            compiler_params=pltpu.CompilerParams(
                dimension_semantics=("parallel",),              # 2 TCs on v7x
                vmem_limit_bytes=4 * 1024 * 1024,               # footprint ~1.2 MiB
            ),
            cost_estimate=pl.CostEstimate(
                flops=2 * M * K * OUT,
                transcendentals=0,
                bytes_accessed=bytes_accessed,
            ),
        )(x, w_t, b2d)

    return forward


if __name__ == "__main__":
    key = jax.random.PRNGKey(0)
    k_x, k_w, k_b = jax.random.split(key, 3)

    B, IN, OUT = 8, 2048, 512

    # Deterministic synthetic parameters (match nn.Linear(2048, 512) layout).
    features = jax.random.normal(k_x, (B, IN), dtype=jnp.float32)
    weight = jax.random.normal(k_w, (OUT, IN), dtype=jnp.float32) * 0.02
    bias = jax.random.normal(k_b, (OUT,), dtype=jnp.float32) * 0.02

    forward = make_contrastive_transform(weight, bias)      # one-time weight prep
    out = jax.block_until_ready(forward(features))
    assert out.shape == (B, OUT)

    # Tight check against a reference matching the in-kernel arithmetic
    # (bf16 operands, f32 accumulation; only summation order differs).
    x_b = features.astype(jnp.bfloat16).astype(jnp.float32)
    w_b = weight.T.astype(jnp.bfloat16).astype(jnp.float32)
    ref_bf16 = jnp.maximum(x_b @ w_b + bias, 0.0)
    assert jnp.allclose(out, ref_bf16, atol=1e-3, rtol=1e-3)

    # Loose check against the true f32 PyTorch-module math (bf16 weight storage
    # introduces ~1e-2 relative error; see precision note above).
    ref_f32 = jnp.maximum(features @ weight.T + bias, 0.0)
    assert jnp.allclose(out, ref_f32, atol=5e-2, rtol=5e-2)

    print("KERNEL_OK")
</pallas_src>

<mosaic_0001>
module attributes {stable_mosaic.version = 11 : i64} {
  func.func @_linear_relu_kernel(%arg0: i32, %arg1: memref<8x2048xbf16, #tpu.memory_space<vmem>>, %arg2: memref<2048x256xbf16, #tpu.memory_space<vmem>>, %arg3: memref<1x256xf32, #tpu.memory_space<vmem>>, %arg4: memref<8x256xf32, #tpu.memory_space<vmem>>) attributes {dimension_semantics = [#tpu.dimension_semantics<parallel>], iteration_bounds = array<i64: 2>, scalar_prefetch = 0 : i64, scratch_operands = 0 : i64, tpu.core_type = #tpu.core_type<tc>, window_params = [{pipeline_mode = #tpu.pipeline_mode<synchronous>, transform_indices = @transform_0, window_bounds = array<i64: 8, 2048>}, {transform_indices = @transform_1, window_bounds = array<i64: 2048, 256>}, {transform_indices = @transform_2, window_bounds = array<i64: 1, 256>}, {transform_indices = @transform_3, window_bounds = array<i64: 8, 256>}]} {
    %c0 = arith.constant 0 : index
    %c0_0 = arith.constant 0 : index
    %0 = vector.load %arg1[%c0, %c0_0] : memref<8x2048xbf16, #tpu.memory_space<vmem>>, vector<8x2048xbf16>
    %c0_1 = arith.constant 0 : index
    %c0_2 = arith.constant 0 : index
    %1 = vector.load %arg2[%c0_1, %c0_2] : memref<2048x256xbf16, #tpu.memory_space<vmem>>, vector<2048x256xbf16>
    %cst = arith.constant dense<0.000000e+00> : vector<8x256xf32>
    %2 = tpu.matmul %0, %1, %cst {dimension_numbers = #tpu.dot_dimension_numbers<[1], [0], [0], [1], [0, 0, 1, 1], [], []>} : vector<8x2048xbf16>, vector<2048x256xbf16>, vector<8x256xf32> -> vector<8x256xf32>
    %c0_3 = arith.constant 0 : index
    %c0_4 = arith.constant 0 : index
    %3 = vector.load %arg3[%c0_3, %c0_4] : memref<1x256xf32, #tpu.memory_space<vmem>>, vector<1x256xf32>
    %4 = vector.broadcast %3 : vector<1x256xf32> to vector<8x256xf32>
    %5 = arith.addf %2, %4 : vector<8x256xf32>
    %cst_5 = arith.constant 0.000000e+00 : f32
    %6 = vector.broadcast %cst_5 : f32 to vector<8x256xf32>
    %7 = arith.maximumf %5, %6 : vector<8x256xf32>
    %c0_6 = arith.constant 0 : index
    %c0_7 = arith.constant 0 : index
    %8 = vector.load %arg4[%c0_6, %c0_7] : memref<8x256xf32, #tpu.memory_space<vmem>>, vector<8x256xf32>
    tpu.vector_store %arg4[%c0_6, %c0_7], %7 {strides = array<i32>} : memref<8x256xf32, #tpu.memory_space<vmem>>, vector<8x256xf32>,
    return
  }
  func.func @transform_0(%arg0: i32) -> (i32, i32) {
    %c0_i32 = arith.constant 0 : i32
    %c0_i32_0 = arith.constant 0 : i32
    %c0_i32_1 = arith.constant 0 : i32
    return %c0_i32, %c0_i32_0 : i32, i32
  }
  func.func @transform_1(%arg0: i32) -> (i32, i32) {
    %c0_i32 = arith.constant 0 : i32
    %c0_i32_0 = arith.constant 0 : i32
    return %c0_i32, %arg0 : i32, i32
  }
  func.func @transform_2(%arg0: i32) -> (i32, i32) {
    %c0_i32 = arith.constant 0 : i32
    %c0_i32_0 = arith.constant 0 : i32
    return %c0_i32, %arg0 : i32, i32
  }
  func.func @transform_3(%arg0: i32) -> (i32, i32) {
    %c0_i32 = arith.constant 0 : i32
    %c0_i32_0 = arith.constant 0 : i32
    return %c0_i32, %arg0 : i32, i32
  }
}

</mosaic_0001>

<llo_original>
// kernel: tpu_custom_call.1
$region0: #{tpu_custom_call.1}
  #allocation0 [shape = 'u32[]', space=smem, size = 0x4, offset = 0x4, fixed_abs, tag = 'smem constant byte address 0x4 - core index']
  #allocation1 [shape = 'u32[72,128]{1,0:T(1,128)}', space=vmem, size = 0x9000, scoped, tag = 'internal scratch']
  %s0 = inlined_call_operand.hbm [shape: bf16[8,2048], index: 0, kind: input, shape index: {}]
  %s1 = inlined_call_operand.hbm [shape: bf16[2048,512], index: 1, kind: input, shape index: {}]
  %s2 = inlined_call_operand.hbm [shape: f32[1,512], index: 2, kind: input, shape index: {}]
  %s3 = inlined_call_operand.hbm [shape: f32[8,512], index: 3, kind: output, shape index: {}]
  %s4 = sld [smem:[#allocation0]]
  $region57: #{tpu_custom_call.1} parent=0
    _
  %s6 = ssub.s32 1, %s4
  %s7 = scalar_select 0, %s6, %s4
  $region1: #{tpu_custom_call.1} parent=0
    #allocation2 [shape = 'u8[32768]{0}', space=vmem, size = 0x8000, scoped, tag = 'input window, operand 0, single buffered']
    #allocation3 [shape = 's32[2]{0}', space=sflag, size = 0x8, scoped, tag = 'scoped memory for tpu_custom_call.1']
    #allocation4 [shape = 's32[2]{0}', space=sflag, size = 0x8, scoped, tag = 'scoped memory for tpu_custom_call.1']
    #allocation5 [shape = 'u8[2097152]{0}', space=vmem, size = 0x200000, scoped, tag = 'input window, operand 1']
    #allocation6 [shape = 's32[2]{0}', space=sflag, size = 0x8, scoped, tag = 'scoped memory for tpu_custom_call.1']
    #allocation7 [shape = 'u8[2048]{0}', space=vmem, size = 0x800, scoped, tag = 'input window, operand 2']
    #allocation8 [shape = 'u8[16384]{0}', space=vmem, size = 0x4000, scoped, tag = 'output window, operand 0']
    %8 = vsyncpa [#allocation3], 0
    %9 = vsyncpa [#allocation6], 0
    %s10 = scalar_lea.sflag [#allocation6], 1
    %11 = vsyncpa %s10, 0
    %12 = vsyncpa [#allocation4], 0
    %s13 = scalar_lea.sflag [#allocation4], 1
    %14 = vsyncpa %s13, 0
    loop: start=0, step=1, limit=4
    $region2: #{tpu_custom_call.1} parent=1 // loop_pre_header
      _
    $region3: #{tpu_custom_call.1} parent=1 // loop_header
      %s16 = sphi 0, %s20
      %p17 = scmp.ge.s32.totalorder %s16, 4
      %s24 = sphi 0, %s24
      %s26 = sphi 0, %s24
      %s27 = sphi 0, %s26
      %s41 = sphi 0, %s27
      %s47 = sphi 0, %s49
      %s50 = sphi 0, %s47
      %s51 = sphi 0, %s50
      %s67 = sphi 0, %s51
      %s73 = sphi 0, %s75
      %s76 = sphi 0, %s73
      %s77 = sphi 0, %s76
      %s93 = sphi 0, %s77
      %s99 = sphi 0, %s101
      %s102 = sphi 0, %s99
      %s103 = sphi 0, %s102
      %s119 = sphi 0, %s103
    $region4: #{tpu_custom_call.1} parent=1 // loop_header_branch
      %19 = sbr.rel (%p17) target = $region8
    $region5: #{tpu_custom_call.1} parent=1 // loop_body
      %s21 = ssub.s32 %s16, 1
      %s22 = ssub.s32 %s16, 2
      %s23 = sadd.s32 %s16, 1
      %s25 = sadd.s32 %s24, 1
      %p28 = scmp.eq.s32.totalorder %s16, 1
      %p29 = scmp.ne.s32.totalorder %s24, %s26
      %p30 = scmp.eq.s32.totalorder %s16, 0
      %p31 = por %p29, %p30
      %p32 = scmp.ne.s32.totalorder %s24, %s26
      %p33 = scmp.eq.s32.totalorder %s21, 1
      %p34 = por %p32, %p33
      %p35 = scmp.ne.s32.totalorder %s26, %s27
      %p36 = scmp.eq.s32.totalorder %s21, 0
      %p37 = por %p35, %p36
      %p38 = scmp.ne.s32.totalorder %s26, %s27
      %p39 = scmp.eq.s32.totalorder %s22, 1
      %p40 = por %p38, %p39
      %p42 = scmp.ne.s32.totalorder %s27, %s41
      %p43 = scmp.eq.s32.totalorder %s22, 0
      %p44 = por %p42, %p43
      %s45 = ssub.s32 %s16, %s23
      %p46 = scmp.eq.s32.totalorder %s45, 0
      %s48 = sadd.s32 %s47, 1
      %s49 = scalar_select %p46, %s47, %s48
      %p52 = pneg %p46
      %p53 = scmp.eq.s32.totalorder %s16, 1
      %p54 = por %p52, %p53
      %p55 = scmp.ne.s32.totalorder %s47, %s50
      %p56 = scmp.eq.s32.totalorder %s16, 0
      %p57 = por %p55, %p56
      %p58 = scmp.ne.s32.totalorder %s47, %s50
      %p59 = scmp.eq.s32.totalorder %s21, 1
      %p60 = por %p58, %p59
      %p61 = scmp.ne.s32.totalorder %s50, %s51
      %p62 = scmp.eq.s32.totalorder %s21, 0
      %p63 = por %p61, %p62
      %p64 = scmp.ne.s32.totalorder %s50, %s51
      %p65 = scmp.eq.s32.totalorder %s22, 1
      %p66 = por %p64, %p65
      %p68 = scmp.ne.s32.totalorder %s51, %s67
      %p69 = scmp.eq.s32.totalorder %s22, 0
      %p70 = por %p68, %p69
      %s71 = ssub.s32 %s16, %s23
      %p72 = scmp.eq.s32.totalorder %s71, 0
      %s74 = sadd.s32 %s73, 1
      %s75 = scalar_select %p72, %s73, %s74
      %p78 = pneg %p72
      %p79 = scmp.eq.s32.totalorder %s16, 1
      %p80 = por %p78, %p79
      %p81 = scmp.ne.s32.totalorder %s73, %s76
      %p82 = scmp.eq.s32.totalorder %s16, 0
      %p83 = por %p81, %p82
      %p84 = scmp.ne.s32.totalorder %s73, %s76
      %p85 = scmp.eq.s32.totalorder %s21, 1
      %p86 = por %p84, %p85
      %p87 = scmp.ne.s32.totalorder %s76, %s77
      %p88 = scmp.eq.s32.totalorder %s21, 0
      %p89 = por %p87, %p88
      %p90 = scmp.ne.s32.totalorder %s76, %s77
      %p91 = scmp.eq.s32.totalorder %s22, 1
      %p92 = por %p90, %p91
      %p94 = scmp.ne.s32.totalorder %s77, %s93
      %p95 = scmp.eq.s32.totalorder %s22, 0
      %p96 = por %p94, %p95
      %s97 = ssub.s32 %s16, %s23
      %p98 = scmp.eq.s32.totalorder %s97, 0
      %s100 = sadd.s32 %s99, 1
      %s101 = scalar_select %p98, %s99, %s100
      %p104 = pneg %p98
      %p105 = scmp.eq.s32.totalorder %s16, 1
      %p106 = por %p104, %p105
      %p107 = scmp.ne.s32.totalorder %s99, %s102
      %p108 = scmp.eq.s32.totalorder %s16, 0
      %p109 = por %p107, %p108
      %p110 = scmp.ne.s32.totalorder %s99, %s102
      %p111 = scmp.eq.s32.totalorder %s21, 1
      %p112 = por %p110, %p111
      %p113 = scmp.ne.s32.totalorder %s102, %s103
      %p114 = scmp.eq.s32.totalorder %s21, 0
      %p115 = por %p113, %p114
      %p116 = scmp.ne.s32.totalorder %s102, %s103
      %p117 = scmp.eq.s32.totalorder %s22, 1
      %p118 = por %p116, %p117
      %p120 = scmp.ne.s32.totalorder %s103, %s119
      %p121 = scmp.eq.s32.totalorder %s22, 0
      %p122 = por %p120, %p121
      %p123 = scmp.le.s32.totalorder 1, %s16
      %p124 = scmp.lt.s32.totalorder %s16, 3
      %p125 = pnand %p123, %p124
      %p126 = pneg %p125
      // Predicated region
      $region9: #{tpu_custom_call.1} parent=5 // pred_check
        _
      $region10: #{tpu_custom_call.1} parent=5 // pred_check_branch
        %128 = sbr.rel (%p125) target = $region12
      $region11: #{tpu_custom_call.1} parent=5 // pred_region
        %s129 = ssub.s32 %s16, 1
        // Predicated region
        $region13: #{tpu_custom_call.1} parent=11 // pred_check
          %p130 = pneg %p37
        $region14: #{tpu_custom_call.1} parent=11 // pred_check_branch
          %132 = sbr.rel (%p130) target = $region16
        $region15: #{tpu_custom_call.1} parent=11 // pred_region
          %134 = vsyncadd [#allocation3], 0
          %s136 = sshll.u32 %s0, 4
          %s137 = int_to_ptr.hbm [resolvable:$true] %s136
          %s138 = sshll.u32 [#allocation2], 4
          %s139 = int_to_ptr.vmem [resolvable:$true] %s138
          %141 = dma.hbm_to_vmem [thread:$0]  %s137, 1024, %s139, [#allocation3]
        $region16: #{tpu_custom_call.1} parent=11 // pred_fallthru
          _
      $region12: #{tpu_custom_call.1} parent=5 // pred_fallthru
        _
      %p142 = scmp.lt.s32.totalorder %s16, 2
      // Predicated region
      $region17: #{tpu_custom_call.1} parent=5 // pred_check
        %p143 = pneg %p142
      $region18: #{tpu_custom_call.1} parent=5 // pred_check_branch
        %145 = sbr.rel (%p143) target = $region20
      $region19: #{tpu_custom_call.1} parent=5 // pred_region
        // Predicated region
        $region21: #{tpu_custom_call.1} parent=19 // pred_check
          %p146 = pneg %p57
        $region22: #{tpu_custom_call.1} parent=19 // pred_check_branch
          %148 = sbr.rel (%p146) target = $region24
        $region23: #{tpu_custom_call.1} parent=19 // pred_region
          %s149 = sand.u32 %s16, 1
          %s150 = scalar_lea.sflag [#allocation6], %s149
          %s151 = sand.u32 %s47, 1
          %s152 = smul.addr %s151, 2048
          %s153 = scalar_lea.vmem [#allocation5], %s152
          %s154 = smul.u32 2, %s16
          %156 = vsyncadd %s150, 0
          %s157 = smul.addr %s154, 4
          %s158 = scalar_lea.hbm %s1, %s157
          %s159 = sshll.u32 %s158, 4
          %s160 = int_to_ptr.hbm [resolvable:$true] %s159
          %s161 = sshll.u32 %s153, 4
          %s162 = int_to_ptr.vmem [resolvable:$true] %s161
          %167 = dma.hbm_to_vmem [thread:$0]  %s160, 32768, %s162, %s150, 256, 128, 8
        $region24: #{tpu_custom_call.1} parent=19 // pred_fallthru
          _
        // Predicated region
        $region25: #{tpu_custom_call.1} parent=19 // pred_check
          %p168 = pneg %p83
        $region26: #{tpu_custom_call.1} parent=19 // pred_check_branch
          %170 = sbr.rel (%p168) target = $region28
        $region27: #{tpu_custom_call.1} parent=19 // pred_region
          %s171 = sand.u32 %s16, 1
          %s172 = scalar_lea.sflag [#allocation6], %s171
          %s173 = sand.u32 %s73, 1
          %s174 = smul.addr %s173, 2
          %s175 = scalar_lea.vmem [#allocation7], %s174
          %s176 = smul.u32 2, %s16
          %178 = vsyncadd %s172, 0
          %s179 = scalar_lea.hbm %s2, %s176
          %s181 = sshll.u32 %s179, 4
          %s182 = int_to_ptr.hbm [resolvable:$true] %s181
          %s183 = sshll.u32 %s175, 4
          %s184 = int_to_ptr.vmem [resolvable:$true] %s183
          %186 = dma.hbm_to_vmem [thread:$0]  %s182, 32, %s184, %s172
        $region28: #{tpu_custom_call.1} parent=19 // pred_fallthru
          _
      $region20: #{tpu_custom_call.1} parent=5 // pred_fallthru
        _
      %p187 = scmp.le.s32.totalorder 1, %s16
      %p188 = scmp.lt.s32.totalorder %s16, 3
      %p189 = pnand %p187, %p188
      %p190 = pneg %p189
      // Predicated region
      $region29: #{tpu_custom_call.1} parent=5 // pred_check
        _
      $region30: #{tpu_custom_call.1} parent=5 // pred_check_branch
        %192 = sbr.rel (%p189) target = $region32
      $region31: #{tpu_custom_call.1} parent=5 // pred_region
        %s193 = ssub.s32 %s16, 1
        // Predicated region
        $region33: #{tpu_custom_call.1} parent=31 // pred_check
          %p194 = pneg %p37
        $region34: #{tpu_custom_call.1} parent=31 // pred_check_branch
          %196 = sbr.rel (%p194) target = $region36
        $region35: #{tpu_custom_call.1} parent=31 // pred_region
          %198 = dma.done [#allocation3], 1024
        $region36: #{tpu_custom_call.1} parent=31 // pred_fallthru
          _
        %s199 = sand.u32 %s21, 1
        %s200 = scalar_lea.sflag [#allocation6], %s199
        %s201 = sand.u32 %s50, 1
        %s202 = smul.addr %s201, 2048
        %s203 = scalar_lea.vmem [#allocation5], %s202
        // Predicated region
        $region37: #{tpu_custom_call.1} parent=31 // pred_check
          %p204 = pneg %p63
        $region38: #{tpu_custom_call.1} parent=31 // pred_check_branch
          %206 = sbr.rel (%p204) target = $region40
        $region39: #{tpu_custom_call.1} parent=31 // pred_region
          %208 = dma.done %s200, 32768
        $region40: #{tpu_custom_call.1} parent=31 // pred_fallthru
          _
        %s209 = sand.u32 %s21, 1
        %s210 = scalar_lea.sflag [#allocation6], %s209
        %s211 = sand.u32 %s76, 1
        %s212 = smul.addr %s211, 2
        %s213 = scalar_lea.vmem [#allocation7], %s212
        // Predicated region
        $region41: #{tpu_custom_call.1} parent=31 // pred_check
          %p214 = pneg %p89
        $region42: #{tpu_custom_call.1} parent=31 // pred_check_branch
          %216 = sbr.rel (%p214) target = $region44
        $region43: #{tpu_custom_call.1} parent=31 // pred_region
          %218 = dma.done %s210, 32
        $region44: #{tpu_custom_call.1} parent=31 // pred_fallthru
          _
        %p219 = pneg %p37
        %p220 = pneg %p34
        %s221 = sand.u32 %s21, 1
        %s222 = scalar_lea.sflag [#allocation6], %s221
        %s223 = sand.u32 %s50, 1
        %s224 = smul.addr %s223, 2048
        %s225 = scalar_lea.vmem [#allocation5], %s224
        %p226 = pneg %p63
        %p227 = pneg %p60
        %s228 = sand.u32 %s21, 1
        %s229 = scalar_lea.sflag [#allocation6], %s228
        %s230 = sand.u32 %s76, 1
        %s231 = smul.addr %s230, 2
        %s232 = scalar_lea.vmem [#allocation7], %s231
        %p233 = pneg %p89
        %p234 = pneg %p86
        %p235 = pneg %p115
        %p236 = pneg %p112
        %s237 = sand.u32 %s102, 1
        %s238 = scalar_lea.sflag [#allocation4], %s237
        %s239 = sand.u32 %s102, 1
        %s240 = smul.addr %s239, 16
        %s241 = scalar_lea.vmem [#allocation8], %s240
        %s242 = smul.u32 2, %s21
        %s243 = smul.u32 2, %s21
        %s244 = smul.u32 2, %s21
        %v245 = vld [vmem:[#allocation2] sm:$0xff]
        %v246 = vld [vmem:[#allocation2 + $0x8] sm:$0xff]
        %v247 = vld [vmem:[#allocation2 + $0x10] sm:$0xff]
        %v248 = vld [vmem:[#allocation2 + $0x18] sm:$0xff]
        %v249 = vld [vmem:[#allocation2 + $0x20] sm:$0xff]
        %v250 = vld [vmem:[#allocation2 + $0x28] sm:$0xff]
        %v251 = vld [vmem:[#allocation2 + $0x30] sm:$0xff]
        %v252 = vld [vmem:[#allocation2 + $0x38] sm:$0xff]
        %v253 = vld [vmem:[%s203] sm:$0xff]
        %v254 = vld [vmem:[%s203 + $0x8] sm:$0xff]
        %v255 = vld [vmem:[%s203 + $0x10] sm:$0xff]
        %v256 = vld [vmem:[%s203 + $0x18] sm:$0xff]
        %v257 = vld [vmem:[%s203 + $0x20] sm:$0xff]
        %v258 = vld [vmem:[%s203 + $0x28] sm:$0xff]
        %v259 = vld [vmem:[%s203 + $0x30] sm:$0xff]
        %v260 = vld [vmem:[%s203 + $0x38] sm:$0xff]
        %v261 = vld [vmem:[%s203 + $0x40] sm:$0xff]
        %v262 = vld [vmem:[%s203 + $0x48] sm:$0xff]
        %v263 = vld [vmem:[%s203 + $0x50] sm:$0xff]
        %v264 = vld [vmem:[%s203 + $0x58] sm:$0xff]
        %v265 = vld [vmem:[%s203 + $0x60] sm:$0xff]
        %v266 = vld [vmem:[%s203 + $0x68] sm:$0xff]
        %v267 = vld [vmem:[%s203 + $0x70] sm:$0xff]
        %v268 = vld [vmem:[%s203 + $0x78] sm:$0xff]
        %v269 = vld [vmem:[%s203 + $0x80] sm:$0xff]
        %v270 = vld [vmem:[%s203 + $0x88] sm:$0xff]
        %v271 = vld [vmem:[%s203 + $0x90] sm:$0xff]
        %v272 = vld [vmem:[%s203 + $0x98] sm:$0xff]
        %v273 = vld [vmem:[%s203 + $0xa0] sm:$0xff]
        %v274 = vld [vmem:[%s203 + $0xa8] sm:$0xff]
        %v275 = vld [vmem:[%s203 + $0xb0] sm:$0xff]
        %v276 = vld [vmem:[%s203 + $0xb8] sm:$0xff]
        %v277 = vld [vmem:[%s203 + $0xc0] sm:$0xff]
        %v278 = vld [vmem:[%s203 + $0xc8] sm:$0xff]
        %v279 = vld [vmem:[%s203 + $0xd0] sm:$0xff]
        %v280 = vld [vmem:[%s203 + $0xd8] sm:$0xff]
        %v281 = vld [vmem:[%s203 + $0xe0] sm:$0xff]
        %v282 = vld [vmem:[%s203 + $0xe8] sm:$0xff]
        %v283 = vld [vmem:[%s203 + $0xf0] sm:$0xff]
        %v284 = vld [vmem:[%s203 + $0xf8] sm:$0xff]
        %v285 = vld [vmem:[%s203 + $0x100] sm:$0xff]
        %v286 = vld [vmem:[%s203 + $0x108] sm:$0xff]
        %v287 = vld [vmem:[%s203 + $0x110] sm:$0xff]
        %v288 = vld [vmem:[%s203 + $0x118] sm:$0xff]
        %v289 = vld [vmem:[%s203 + $0x120] sm:$0xff]
        %v290 = vld [vmem:[%s203 + $0x128] sm:$0xff]
        %v291 = vld [vmem:[%s203 + $0x130] sm:$0xff]
        %v292 = vld [vmem:[%s203 + $0x138] sm:$0xff]
        %v293 = vld [vmem:[%s203 + $0x140] sm:$0xff]
        %v294 = vld [vmem:[%s203 + $0x148] sm:$0xff]
        %v295 = vld [vmem:[%s203 + $0x150] sm:$0xff]
        %v296 = vld [vmem:[%s203 + $0x158] sm:$0xff]
        %v297 = vld [vmem:[%s203 + $0x160] sm:$0xff]
        %v298 = vld [vmem:[%s203 + $0x168] sm:$0xff]
        %v299 = vld [vmem:[%s203 + $0x170] sm:$0xff]
        %v300 = vld [vmem:[%s203 + $0x178] sm:$0xff]
        %v301 = vld [vmem:[%s203 + $0x180] sm:$0xff]
        %v302 = vld [vmem:[%s203 + $0x188] sm:$0xff]
        %v303 = vld [vmem:[%s203 + $0x190] sm:$0xff]
        %v304 = vld [vmem:[%s203 + $0x198] sm:$0xff]
        %v305 = vld [vmem:[%s203 + $0x1a0] sm:$0xff]
        %v306 = vld [vmem:[%s203 + $0x1a8] sm:$0xff]
        %v307 = vld [vmem:[%s203 + $0x1b0] sm:$0xff]
        %v308 = vld [vmem:[%s203 + $0x1b8] sm:$0xff]
        %v309 = vld [vmem:[%s203 + $0x1c0] sm:$0xff]
        %v310 = vld [vmem:[%s203 + $0x1c8] sm:$0xff]
        %v311 = vld [vmem:[%s203 + $0x1d0] sm:$0xff]
        %v312 = vld [vmem:[%s203 + $0x1d8] sm:$0xff]
        %v313 = vld [vmem:[%s203 + $0x1e0] sm:$0xff]
        %v314 = vld [vmem:[%s203 + $0x1e8] sm:$0xff]
        %v315 = vld [vmem:[%s203 + $0x1f0] sm:$0xff]
        %v316 = vld [vmem:[%s203 + $0x1f8] sm:$0xff]
        %v317 = vld [vmem:[%s203 + $0x200] sm:$0xff]
        %v318 = vld [vmem:[%s203 + $0x208] sm:$0xff]
        %v319 = vld [vmem:[%s203 + $0x210] sm:$0xff]
        %v320 = vld [vmem:[%s203 + $0x218] sm:$0xff]
        %v321 = vld [vmem:[%s203 + $0x220] sm:$0xff]
        %v322 = vld [vmem:[%s203 + $0x228] sm:$0xff]
        %v323 = vld [vmem:[%s203 + $0x230] sm:$0xff]
        %v324 = vld [vmem:[%s203 + $0x238] sm:$0xff]
        %v325 = vld [vmem:[%s203 + $0x240] sm:$0xff]
        %v326 = vld [vmem:[%s203 + $0x248] sm:$0xff]
        %v327 = vld [vmem:[%s203 + $0x250] sm:$0xff]
        %v328 = vld [vmem:[%s203 + $0x258] sm:$0xff]
        %v329 = vld [vmem:[%s203 + $0x260] sm:$0xff]
        %v330 = vld [vmem:[%s203 + $0x268] sm:$0xff]
        %v331 = vld [vmem:[%s203 + $0x270] sm:$0xff]
        %v332 = vld [vmem:[%s203 + $0x278] sm:$0xff]
        %v333 = vld [vmem:[%s203 + $0x280] sm:$0xff]
        %v334 = vld [vmem:[%s203 + $0x288] sm:$0xff]
        %v335 = vld [vmem:[%s203 + $0x290] sm:$0xff]
        %v336 = vld [vmem:[%s203 + $0x298] sm:$0xff]
        %v337 = vld [vmem:[%s203 + $0x2a0] sm:$0xff]
        %v338 = vld [vmem:[%s203 + $0x2a8] sm:$0xff]
        %v339 = vld [vmem:[%s203 + $0x2b0] sm:$0xff]
        %v340 = vld [vmem:[%s203 + $0x2b8] sm:$0xff]
        %v341 = vld [vmem:[%s203 + $0x2c0] sm:$0xff]
        %v342 = vld [vmem:[%s203 + $0x2c8] sm:$0xff]
        %v343 = vld [vmem:[%s203 + $0x2d0] sm:$0xff]
        %v344 = vld [vmem:[%s203 + $0x2d8] sm:$0xff]
        %v345 = vld [vmem:[%s203 + $0x2e0] sm:$0xff]
        %v346 = vld [vmem:[%s203 + $0x2e8] sm:$0xff]
        %v347 = vld [vmem:[%s203 + $0x2f0] sm:$0xff]
        %v348 = vld [vmem:[%s203 + $0x2f8] sm:$0xff]
        %v349 = vld [vmem:[%s203 + $0x300] sm:$0xff]
        %v350 = vld [vmem:[%s203 + $0x308] sm:$0xff]
        %v351 = vld [vmem:[%s203 + $0x310] sm:$0xff]
        %v352 = vld [vmem:[%s203 + $0x318] sm:$0xff]
        %v353 = vld [vmem:[%s203 + $0x320] sm:$0xff]
        %v354 = vld [vmem:[%s203 + $0x328] sm:$0xff]
        %v355 = vld [vmem:[%s203 + $0x330] sm:$0xff]
        %v356 = vld [vmem:[%s203 + $0x338] sm:$0xff]
        %v357 = vld [vmem:[%s203 + $0x340] sm:$0xff]
        %v358 = vld [vmem:[%s203 + $0x348] sm:$0xff]
        %v359 = vld [vmem:[%s203 + $0x350] sm:$0xff]
        %v360 = vld [vmem:[%s203 + $0x358] sm:$0xff]
        %v361 = vld [vmem:[%s203 + $0x360] sm:$0xff]
        %v362 = vld [vmem:[%s203 + $0x368] sm:$0xff]
        %v363 = vld [vmem:[%s203 + $0x370] sm:$0xff]
        %v364 = vld [vmem:[%s203 + $0x378] sm:$0xff]
        %v365 = vld [vmem:[%s203 + $0x380] sm:$0xff]
        %v366 = vld [vmem:[%s203 + $0x388] sm:$0xff]
        %v367 = vld [vmem:[%s203 + $0x390] sm:$0xff]
        %v368 = vld [vmem:[%s203 + $0x398] sm:$0xff]
        %v369 = vld [vmem:[%s203 + $0x3a0] sm:$0xff]
        %v370 = vld [vmem:[%s203 + $0x3a8] sm:$0xff]
        %v371 = vld [vmem:[%s203 + $0x3b0] sm:$0xff]
        %v372 = vld [vmem:[%s203 + $0x3b8] sm:$0xff]
        %v373 = vld [vmem:[%s203 + $0x3c0] sm:$0xff]
        %v374 = vld [vmem:[%s203 + $0x3c8] sm:$0xff]
        %v375 = vld [vmem:[%s203 + $0x3d0] sm:$0xff]
        %v376 = vld [vmem:[%s203 + $0x3d8] sm:$0xff]
        %v377 = vld [vmem:[%s203 + $0x3e0] sm:$0xff]
        %v378 = vld [vmem:[%s203 + $0x3e8] sm:$0xff]
        %v379 = vld [vmem:[%s203 + $0x3f0] sm:$0xff]
        %v380 = vld [vmem:[%s203 + $0x3f8] sm:$0xff]
        %v381 = vld [vmem:[%s203 + $0x400] sm:$0xff]
        %v382 = vld [vmem:[%s203 + $0x408] sm:$0xff]
        %v383 = vld [vmem:[%s203 + $0x410] sm:$0xff]
        %v384 = vld [vmem:[%s203 + $0x418] sm:$0xff]
        %v385 = vld [vmem:[%s203 + $0x420] sm:$0xff]
        %v386 = vld [vmem:[%s203 + $0x428] sm:$0xff]
        %v387 = vld [vmem:[%s203 + $0x430] sm:$0xff]
        %v388 = vld [vmem:[%s203 + $0x438] sm:$0xff]
        %v389 = vld [vmem:[%s203 + $0x440] sm:$0xff]
        %v390 = vld [vmem:[%s203 + $0x448] sm:$0xff]
        %v391 = vld [vmem:[%s203 + $0x450] sm:$0xff]
        %v392 = vld [vmem:[%s203 + $0x458] sm:$0xff]
        %v393 = vld [vmem:[%s203 + $0x460] sm:$0xff]
        %v394 = vld [vmem:[%s203 + $0x468] sm:$0xff]
        %v395 = vld [vmem:[%s203 + $0x470] sm:$0xff]
        %v396 = vld [vmem:[%s203 + $0x478] sm:$0xff]
        %v397 = vld [vmem:[%s203 + $0x480] sm:$0xff]
        %v398 = vld [vmem:[%s203 + $0x488] sm:$0xff]
        %v399 = vld [vmem:[%s203 + $0x490] sm:$0xff]
        %v400 = vld [vmem:[%s203 + $0x498] sm:$0xff]
        %v401 = vld [vmem:[%s203 + $0x4a0] sm:$0xff]
        %v402 = vld [vmem:[%s203 + $0x4a8] sm:$0xff]
        %v403 = vld [vmem:[%s203 + $0x4b0] sm:$0xff]
        %v404 = vld [vmem:[%s203 + $0x4b8] sm:$0xff]
        %v405 = vld [vmem:[%s203 + $0x4c0] sm:$0xff]
        %v406 = vld [vmem:[%s203 + $0x4c8] sm:$0xff]
        %v407 = vld [vmem:[%s203 + $0x4d0] sm:$0xff]
        %v408 = vld [vmem:[%s203 + $0x4d8] sm:$0xff]
        %v409 = vld [vmem:[%s203 + $0x4e0] sm:$0xff]
        %v410 = vld [vmem:[%s203 + $0x4e8] sm:$0xff]
        %v411 = vld [vmem:[%s203 + $0x4f0] sm:$0xff]
        %v412 = vld [vmem:[%s203 + $0x4f8] sm:$0xff]
        %v413 = vld [vmem:[%s203 + $0x500] sm:$0xff]
        %v414 = vld [vmem:[%s203 + $0x508] sm:$0xff]
        %v415 = vld [vmem:[%s203 + $0x510] sm:$0xff]
        %v416 = vld [vmem:[%s203 + $0x518] sm:$0xff]
        %v417 = vld [vmem:[%s203 + $0x520] sm:$0xff]
        %v418 = vld [vmem:[%s203 + $0x528] sm:$0xff]
        %v419 = vld [vmem:[%s203 + $0x530] sm:$0xff]
        %v420 = vld [vmem:[%s203 + $0x538] sm:$0xff]
        %v421 = vld [vmem:[%s203 + $0x540] sm:$0xff]
        %v422 = vld [vmem:[%s203 + $0x548] sm:$0xff]
        %v423 = vld [vmem:[%s203 + $0x550] sm:$0xff]
        %v424 = vld [vmem:[%s203 + $0x558] sm:$0xff]
        %v425 = vld [vmem:[%s203 + $0x560] sm:$0xff]
        %v426 = vld [vmem:[%s203 + $0x568] sm:$0xff]
        %v427 = vld [vmem:[%s203 + $0x570] sm:$0xff]
        %v428 = vld [vmem:[%s203 + $0x578] sm:$0xff]
        %v429 = vld [vmem:[%s203 + $0x580] sm:$0xff]
        %v430 = vld [vmem:[%s203 + $0x588] sm:$0xff]
        %v431 = vld [vmem:[%s203 + $0x590] sm:$0xff]
        %v432 = vld [vmem:[%s203 + $0x598] sm:$0xff]
        %v433 = vld [vmem:[%s203 + $0x5a0] sm:$0xff]
        %v434 = vld [vmem:[%s203 + $0x5a8] sm:$0xff]
        %v435 = vld [vmem:[%s203 + $0x5b0] sm:$0xff]
        %v436 = vld [vmem:[%s203 + $0x5b8] sm:$0xff]
        %v437 = vld [vmem:[%s203 + $0x5c0] sm:$0xff]
        %v438 = vld [vmem:[%s203 + $0x5c8] sm:$0xff]
        %v439 = vld [vmem:[%s203 + $0x5d0] sm:$0xff]
        %v440 = vld [vmem:[%s203 + $0x5d8] sm:$0xff]
        %v441 = vld [vmem:[%s203 + $0x5e0] sm:$0xff]
        %v442 = vld [vmem:[%s203 + $0x5e8] sm:$0xff]
        %v443 = vld [vmem:[%s203 + $0x5f0] sm:$0xff]
        %v444 = vld [vmem:[%s203 + $0x5f8] sm:$0xff]
        %v445 = vld [vmem:[%s203 + $0x600] sm:$0xff]
        %v446 = vld [vmem:[%s203 + $0x608] sm:$0xff]
        %v447 = vld [vmem:[%s203 + $0x610] sm:$0xff]
        %v448 = vld [vmem:[%s203 + $0x618] sm:$0xff]
        %v449 = vld [vmem:[%s203 + $0x620] sm:$0xff]
        %v450 = vld [vmem:[%s203 + $0x628] sm:$0xff]
        %v451 = vld [vmem:[%s203 + $0x630] sm:$0xff]
        %v452 = vld [vmem:[%s203 + $0x638] sm:$0xff]
        %v453 = vld [vmem:[%s203 + $0x640] sm:$0xff]
        %v454 = vld [vmem:[%s203 + $0x648] sm:$0xff]
        %v455 = vld [vmem:[%s203 + $0x650] sm:$0xff]
        %v456 = vld [vmem:[%s203 + $0x658] sm:$0xff]
        %v457 = vld [vmem:[%s203 + $0x660] sm:$0xff]
        %v458 = vld [vmem:[%s203 + $0x668] sm:$0xff]
        %v459 = vld [vmem:[%s203 + $0x670] sm:$0xff]
        %v460 = vld [vmem:[%s203 + $0x678] sm:$0xff]
        %v461 = vld [vmem:[%s203 + $0x680] sm:$0xff]
        %v462 = vld [vmem:[%s203 + $0x688] sm:$0xff]
        %v463 = vld [vmem:[%s203 + $0x690] sm:$0xff]
        %v464 = vld [vmem:[%s203 + $0x698] sm:$0xff]
        %v465 = vld [vmem:[%s203 + $0x6a0] sm:$0xff]
        %v466 = vld [vmem:[%s203 + $0x6a8] sm:$0xff]
        %v467 = vld [vmem:[%s203 + $0x6b0] sm:$0xff]
        %v468 = vld [vmem:[%s203 + $0x6b8] sm:$0xff]
        %v469 = vld [vmem:[%s203 + $0x6c0] sm:$0xff]
        %v470 = vld [vmem:[%s203 + $0x6c8] sm:$0xff]
        %v471 = vld [vmem:[%s203 + $0x6d0] sm:$0xff]
        %v472 = vld [vmem:[%s203 + $0x6d8] sm:$0xff]
        %v473 = vld [vmem:[%s203 + $0x6e0] sm:$0xff]
        %v474 = vld [vmem:[%s203 + $0x6e8] sm:$0xff]
        %v475 = vld [vmem:[%s203 + $0x6f0] sm:$0xff]
        %v476 = vld [vmem:[%s203 + $0x6f8] sm:$0xff]
        %v477 = vld [vmem:[%s203 + $0x700] sm:$0xff]
        %v478 = vld [vmem:[%s203 + $0x708] sm:$0xff]
        %v479 = vld [vmem:[%s203 + $0x710] sm:$0xff]
        %v480 = vld [vmem:[%s203 + $0x718] sm:$0xff]
        %v481 = vld [vmem:[%s203 + $0x720] sm:$0xff]
        %v482 = vld [vmem:[%s203 + $0x728] sm:$0xff]
        %v483 = vld [vmem:[%s203 + $0x730] sm:$0xff]
        %v484 = vld [vmem:[%s203 + $0x738] sm:$0xff]
        %v485 = vld [vmem:[%s203 + $0x740] sm:$0xff]
        %v486 = vld [vmem:[%s203 + $0x748] sm:$0xff]
        %v487 = vld [vmem:[%s203 + $0x750] sm:$0xff]
        %v488 = vld [vmem:[%s203 + $0x758] sm:$0xff]
        %v489 = vld [vmem:[%s203 + $0x760] sm:$0xff]
        %v490 = vld [vmem:[%s203 + $0x768] sm:$0xff]
        %v491 = vld [vmem:[%s203 + $0x770] sm:$0xff]
        %v492 = vld [vmem:[%s203 + $0x778] sm:$0xff]
        %v493 = vld [vmem:[%s203 + $0x780] sm:$0xff]
        %v494 = vld [vmem:[%s203 + $0x788] sm:$0xff]
        %v495 = vld [vmem:[%s203 + $0x790] sm:$0xff]
        %v496 = vld [vmem:[%s203 + $0x798] sm:$0xff]
        %v497 = vld [vmem:[%s203 + $0x7a0] sm:$0xff]
        %v498 = vld [vmem:[%s203 + $0x7a8] sm:$0xff]
        %v499 = vld [vmem:[%s203 + $0x7b0] sm:$0xff]
        %v500 = vld [vmem:[%s203 + $0x7b8] sm:$0xff]
        %v501 = vld [vmem:[%s203 + $0x7c0] sm:$0xff]
        %v502 = vld [vmem:[%s203 + $0x7c8] sm:$0xff]
        %v503 = vld [vmem:[%s203 + $0x7d0] sm:$0xff]
        %v504 = vld [vmem:[%s203 + $0x7d8] sm:$0xff]
        %v505 = vld [vmem:[%s203 + $0x7e0] sm:$0xff]
        %v506 = vld [vmem:[%s203 + $0x7e8] sm:$0xff]
        %v507 = vld [vmem:[%s203 + $0x7f0] sm:$0xff]
        %v508 = vld [vmem:[%s203 + $0x7f8] sm:$0xff]
        %v509 = vld [vmem:[%s213] sm:$0x3]
        %v511 = vperm.slane %v509, 0
        %v512 = vperm.slane %v509, 1
        %v523 = vunpack.c.l.b16 %v245
        %v524 = vunpack.c.h.b16 %v245
        %v525 = vunpack.c.l.b16 %v246
        %v526 = vunpack.c.h.b16 %v246
        %v527 = vunpack.c.l.b16 %v247
        %v528 = vunpack.c.h.b16 %v247
        %v529 = vunpack.c.l.b16 %v248
        %v530 = vunpack.c.h.b16 %v248
        %v531 = vunpack.c.l.b16 %v249
        %v532 = vunpack.c.h.b16 %v249
        %v533 = vunpack.c.l.b16 %v250
        %v534 = vunpack.c.h.b16 %v250
        %v535 = vunpack.c.l.b16 %v251
        %v536 = vunpack.c.h.b16 %v251
        %v537 = vunpack.c.l.b16 %v252
        %v538 = vunpack.c.h.b16 %v252
        %v539 = vpack.c.b16 %v523, %v523
        %v540 = vpack.c.b16 %v524, %v524
        %v541 = vpack.c.b16 %v525, %v525
        %v542 = vpack.c.b16 %v526, %v526
        %v543 = vpack.c.b16 %v527, %v527
        %v544 = vpack.c.b16 %v528, %v528
        %v545 = vpack.c.b16 %v529, %v529
        %v546 = vpack.c.b16 %v530, %v530
        %v547 = vpack.c.b16 %v531, %v531
        %v548 = vpack.c.b16 %v532, %v532
        %v549 = vpack.c.b16 %v533, %v533
        %v550 = vpack.c.b16 %v534, %v534
        %v551 = vpack.c.b16 %v535, %v535
        %v552 = vpack.c.b16 %v536, %v536
        %v553 = vpack.c.b16 %v537, %v537
        %v554 = vpack.c.b16 %v538, %v538
        %v827 = vunpack.c.l.b16 %v253
        %v828 = vunpack.c.h.b16 %v253
        %v829 = vunpack.c.l.b16 %v254
        %v830 = vunpack.c.h.b16 %v254
        %v831 = vunpack.c.l.b16 %v255
        %v832 = vunpack.c.h.b16 %v255
        %v833 = vunpack.c.l.b16 %v256
        %v834 = vunpack.c.h.b16 %v256
        %v835 = vunpack.c.l.b16 %v257
        %v836 = vunpack.c.h.b16 %v257
        %v837 = vunpack.c.l.b16 %v258
        %v838 = vunpack.c.h.b16 %v258
        %v839 = vunpack.c.l.b16 %v259
        %v840 = vunpack.c.h.b16 %v259
        %v841 = vunpack.c.l.b16 %v260
        %v842 = vunpack.c.h.b16 %v260
        %v843 = vunpack.c.l.b16 %v261
        %v844 = vunpack.c.h.b16 %v261
        %v845 = vunpack.c.l.b16 %v262
        %v846 = vunpack.c.h.b16 %v262
        %v847 = vunpack.c.l.b16 %v263
        %v848 = vunpack.c.h.b16 %v263
        %v849 = vunpack.c.l.b16 %v264
        %v850 = vunpack.c.h.b16 %v264
        %v851 = vunpack.c.l.b16 %v265
        %v852 = vunpack.c.h.b16 %v265
        %v853 = vunpack.c.l.b16 %v266
        %v854 = vunpack.c.h.b16 %v266
        %v855 = vunpack.c.l.b16 %v267
        %v856 = vunpack.c.h.b16 %v267
        %v857 = vunpack.c.l.b16 %v268
        %v858 = vunpack.c.h.b16 %v268
        %v859 = vunpack.c.l.b16 %v269
        %v860 = vunpack.c.h.b16 %v269
        %v861 = vunpack.c.l.b16 %v270
        %v862 = vunpack.c.h.b16 %v270
        %v863 = vunpack.c.l.b16 %v271
        %v864 = vunpack.c.h.b16 %v271
        %v865 = vunpack.c.l.b16 %v272
        %v866 = vunpack.c.h.b16 %v272
        %v867 = vunpack.c.l.b16 %v273
        %v868 = vunpack.c.h.b16 %v273
        %v869 = vunpack.c.l.b16 %v274
        %v870 = vunpack.c.h.b16 %v274
        %v871 = vunpack.c.l.b16 %v275
        %v872 = vunpack.c.h.b16 %v275
        %v873 = vunpack.c.l.b16 %v276
        %v874 = vunpack.c.h.b16 %v276
        %v875 = vunpack.c.l.b16 %v277
        %v876 = vunpack.c.h.b16 %v277
        %v877 = vunpack.c.l.b16 %v278
        %v878 = vunpack.c.h.b16 %v278
        %v879 = vunpack.c.l.b16 %v279
        %v880 = vunpack.c.h.b16 %v279
        %v881 = vunpack.c.l.b16 %v280
        %v882 = vunpack.c.h.b16 %v280
        %v883 = vunpack.c.l.b16 %v281
        %v884 = vunpack.c.h.b16 %v281
        %v885 = vunpack.c.l.b16 %v282
        %v886 = vunpack.c.h.b16 %v282
        %v887 = vunpack.c.l.b16 %v283
        %v888 = vunpack.c.h.b16 %v283
        %v889 = vunpack.c.l.b16 %v284
        %v890 = vunpack.c.h.b16 %v284
        %v891 = vunpack.c.l.b16 %v285
        %v892 = vunpack.c.h.b16 %v285
        %v893 = vunpack.c.l.b16 %v286
        %v894 = vunpack.c.h.b16 %v286
        %v895 = vunpack.c.l.b16 %v287
        %v896 = vunpack.c.h.b16 %v287
        %v897 = vunpack.c.l.b16 %v288
        %v898 = vunpack.c.h.b16 %v288
        %v899 = vunpack.c.l.b16 %v289
        %v900 = vunpack.c.h.b16 %v289
        %v901 = vunpack.c.l.b16 %v290
        %v902 = vunpack.c.h.b16 %v290
        %v903 = vunpack.c.l.b16 %v291
        %v904 = vunpack.c.h.b16 %v291
        %v905 = vunpack.c.l.b16 %v292
        %v906 = vunpack.c.h.b16 %v292
        %v907 = vunpack.c.l.b16 %v293
        %v908 = vunpack.c.h.b16 %v293
        %v909 = vunpack.c.l.b16 %v294
        %v910 = vunpack.c.h.b16 %v294
        %v911 = vunpack.c.l.b16 %v295
        %v912 = vunpack.c.h.b16 %v295
        %v913 = vunpack.c.l.b16 %v296
        %v914 = vunpack.c.h.b16 %v296
        %v915 = vunpack.c.l.b16 %v297
        %v916 = vunpack.c.h.b16 %v297
        %v917 = vunpack.c.l.b16 %v298
        %v918 = vunpack.c.h.b16 %v298
        %v919 = vunpack.c.l.b16 %v299
        %v920 = vunpack.c.h.b16 %v299
        %v921 = vunpack.c.l.b16 %v300
        %v922 = vunpack.c.h.b16 %v300
        %v923 = vunpack.c.l.b16 %v301
        %v924 = vunpack.c.h.b16 %v301
        %v925 = vunpack.c.l.b16 %v302
        %v926 = vunpack.c.h.b16 %v302
        %v927 = vunpack.c.l.b16 %v303
        %v928 = vunpack.c.h.b16 %v303
        %v929 = vunpack.c.l.b16 %v304
        %v930 = vunpack.c.h.b16 %v304
        %v931 = vunpack.c.l.b16 %v305
        %v932 = vunpack.c.h.b16 %v305
        %v933 = vunpack.c.l.b16 %v306
        %v934 = vunpack.c.h.b16 %v306
        %v935 = vunpack.c.l.b16 %v307
        %v936 = vunpack.c.h.b16 %v307
        %v937 = vunpack.c.l.b16 %v308
        %v938 = vunpack.c.h.b16 %v308
        %v939 = vunpack.c.l.b16 %v309
        %v940 = vunpack.c.h.b16 %v309
        %v941 = vunpack.c.l.b16 %v310
        %v942 = vunpack.c.h.b16 %v310
        %v943 = vunpack.c.l.b16 %v311
        %v944 = vunpack.c.h.b16 %v311
        %v945 = vunpack.c.l.b16 %v312
        %v946 = vunpack.c.h.b16 %v312
        %v947 = vunpack.c.l.b16 %v313
        %v948 = vunpack.c.h.b16 %v313
        %v949 = vunpack.c.l.b16 %v314
        %v950 = vunpack.c.h.b16 %v314
        %v951 = vunpack.c.l.b16 %v315
        %v952 = vunpack.c.h.b16 %v315
        %v953 = vunpack.c.l.b16 %v316
        %v954 = vunpack.c.h.b16 %v316
        %v955 = vunpack.c.l.b16 %v317
        %v956 = vunpack.c.h.b16 %v317
        %v957 = vunpack.c.l.b16 %v318
        %v958 = vunpack.c.h.b16 %v318
        %v959 = vunpack.c.l.b16 %v319
        %v960 = vunpack.c.h.b16 %v319
        %v961 = vunpack.c.l.b16 %v320
        %v962 = vunpack.c.h.b16 %v320
        %v963 = vunpack.c.l.b16 %v321
        %v964 = vunpack.c.h.b16 %v321
        %v965 = vunpack.c.l.b16 %v322
        %v966 = vunpack.c.h.b16 %v322
        %v967 = vunpack.c.l.b16 %v323
        %v968 = vunpack.c.h.b16 %v323
        %v969 = vunpack.c.l.b16 %v324
        %v970 = vunpack.c.h.b16 %v324
        %v971 = vunpack.c.l.b16 %v325
        %v972 = vunpack.c.h.b16 %v325
        %v973 = vunpack.c.l.b16 %v326
        %v974 = vunpack.c.h.b16 %v326
        %v975 = vunpack.c.l.b16 %v327
        %v976 = vunpack.c.h.b16 %v327
        %v977 = vunpack.c.l.b16 %v328
        %v978 = vunpack.c.h.b16 %v328
        %v979 = vunpack.c.l.b16 %v329
        %v980 = vunpack.c.h.b16 %v329
        %v981 = vunpack.c.l.b16 %v330
        %v982 = vunpack.c.h.b16 %v330
        %v983 = vunpack.c.l.b16 %v331
        %v984 = vunpack.c.h.b16 %v331
        %v985 = vunpack.c.l.b16 %v332
        %v986 = vunpack.c.h.b16 %v332
        %v987 = vunpack.c.l.b16 %v333
        %v988 = vunpack.c.h.b16 %v333
        %v989 = vunpack.c.l.b16 %v334
        %v990 = vunpack.c.h.b16 %v334
        %v991 = vunpack.c.l.b16 %v335
        %v992 = vunpack.c.h.b16 %v335
        %v993 = vunpack.c.l.b16 %v336
        %v994 = vunpack.c.h.b16 %v336
        %v995 = vunpack.c.l.b16 %v337
        %v996 = vunpack.c.h.b16 %v337
        %v997 = vunpack.c.l.b16 %v338
        %v998 = vunpack.c.h.b16 %v338
        %v999 = vunpack.c.l.b16 %v339
        %v1000 = vunpack.c.h.b16 %v339
        %v1001 = vunpack.c.l.b16 %v340
        %v1002 = vunpack.c.h.b16 %v340
        %v1003 = vunpack.c.l.b16 %v341
        %v1004 = vunpack.c.h.b16 %v341
        %v1005 = vunpack.c.l.b16 %v342
        %v1006 = vunpack.c.h.b16 %v342
        %v1007 = vunpack.c.l.b16 %v343
        %v1008 = vunpack.c.h.b16 %v343
        %v1009 = vunpack.c.l.b16 %v344
        %v1010 = vunpack.c.h.b16 %v344
        %v1011 = vunpack.c.l.b16 %v345
        %v1012 = vunpack.c.h.b16 %v345
        %v1013 = vunpack.c.l.b16 %v346
        %v1014 = vunpack.c.h.b16 %v346
        %v1015 = vunpack.c.l.b16 %v347
        %v1016 = vunpack.c.h.b16 %v347
        %v1017 = vunpack.c.l.b16 %v348
        %v1018 = vunpack.c.h.b16 %v348
        %v1019 = vunpack.c.l.b16 %v349
        %v1020 = vunpack.c.h.b16 %v349
        %v1021 = vunpack.c.l.b16 %v350
        %v1022 = vunpack.c.h.b16 %v350
        %v1023 = vunpack.c.l.b16 %v351
        %v1024 = vunpack.c.h.b16 %v351
        %v1025 = vunpack.c.l.b16 %v352
        %v1026 = vunpack.c.h.b16 %v352
        %v1027 = vunpack.c.l.b16 %v353
        %v1028 = vunpack.c.h.b16 %v353
        %v1029 = vunpack.c.l.b16 %v354
        %v1030 = vunpack.c.h.b16 %v354
        %v1031 = vunpack.c.l.b16 %v355
        %v1032 = vunpack.c.h.b16 %v355
        %v1033 = vunpack.c.l.b16 %v356
        %v1034 = vunpack.c.h.b16 %v356
        %v1035 = vunpack.c.l.b16 %v357
        %v1036 = vunpack.c.h.b16 %v357
        %v1037 = vunpack.c.l.b16 %v358
        %v1038 = vunpack.c.h.b16 %v358
        %v1039 = vunpack.c.l.b16 %v359
        %v1040 = vunpack.c.h.b16 %v359
        %v1041 = vunpack.c.l.b16 %v360
        %v1042 = vunpack.c.h.b16 %v360
        %v1043 = vunpack.c.l.b16 %v361
        %v1044 = vunpack.c.h.b16 %v361
        %v1045 = vunpack.c.l.b16 %v362
        %v1046 = vunpack.c.h.b16 %v362
        %v1047 = vunpack.c.l.b16 %v363
        %v1048 = vunpack.c.h.b16 %v363
        %v1049 = vunpack.c.l.b16 %v364
        %v1050 = vunpack.c.h.b16 %v364
        %v1051 = vunpack.c.l.b16 %v365
        %v1052 = vunpack.c.h.b16 %v365
        %v1053 = vunpack.c.l.b16 %v366
        %v1054 = vunpack.c.h.b16 %v366
        %v1055 = vunpack.c.l.b16 %v367
        %v1056 = vunpack.c.h.b16 %v367
        %v1057 = vunpack.c.l.b16 %v368
        %v1058 = vunpack.c.h.b16 %v368
        %v1059 = vunpack.c.l.b16 %v369
        %v1060 = vunpack.c.h.b16 %v369
        %v1061 = vunpack.c.l.b16 %v370
        %v1062 = vunpack.c.h.b16 %v370
        %v1063 = vunpack.c.l.b16 %v371
        %v1064 = vunpack.c.h.b16 %v371
        %v1065 = vunpack.c.l.b16 %v372
        %v1066 = vunpack.c.h.b16 %v372
        %v1067 = vunpack.c.l.b16 %v373
        %v1068 = vunpack.c.h.b16 %v373
        %v1069 = vunpack.c.l.b16 %v374
        %v1070 = vunpack.c.h.b16 %v374
        %v1071 = vunpack.c.l.b16 %v375
        %v1072 = vunpack.c.h.b16 %v375
        %v1073 = vunpack.c.l.b16 %v376
        %v1074 = vunpack.c.h.b16 %v376
        %v1075 = vunpack.c.l.b16 %v377
        %v1076 = vunpack.c.h.b16 %v377
        %v1077 = vunpack.c.l.b16 %v378
        %v1078 = vunpack.c.h.b16 %v378
        %v1079 = vunpack.c.l.b16 %v379
        %v1080 = vunpack.c.h.b16 %v379
        %v1081 = vunpack.c.l.b16 %v380
        %v1082 = vunpack.c.h.b16 %v380
        %v1083 = vunpack.c.l.b16 %v381
        %v1084 = vunpack.c.h.b16 %v381
        %v1085 = vunpack.c.l.b16 %v382
        %v1086 = vunpack.c.h.b16 %v382
        %v1087 = vunpack.c.l.b16 %v383
        %v1088 = vunpack.c.h.b16 %v383
        %v1089 = vunpack.c.l.b16 %v384
        %v1090 = vunpack.c.h.b16 %v384
        %v1091 = vunpack.c.l.b16 %v385
        %v1092 = vunpack.c.h.b16 %v385
        %v1093 = vunpack.c.l.b16 %v386
        %v1094 = vunpack.c.h.b16 %v386
        %v1095 = vunpack.c.l.b16 %v387
        %v1096 = vunpack.c.h.b16 %v387
        %v1097 = vunpack.c.l.b16 %v388
        %v1098 = vunpack.c.h.b16 %v388
        %v1099 = vunpack.c.l.b16 %v389
        %v1100 = vunpack.c.h.b16 %v389
        %v1101 = vunpack.c.l.b16 %v390
        %v1102 = vunpack.c.h.b16 %v390
        %v1103 = vunpack.c.l.b16 %v391
        %v1104 = vunpack.c.h.b16 %v391
        %v1105 = vunpack.c.l.b16 %v392
        %v1106 = vunpack.c.h.b16 %v392
        %v1107 = vunpack.c.l.b16 %v393
        %v1108 = vunpack.c.h.b16 %v393
        %v1109 = vunpack.c.l.b16 %v394
        %v1110 = vunpack.c.h.b16 %v394
        %v1111 = vunpack.c.l.b16 %v395
        %v1112 = vunpack.c.h.b16 %v395
        %v1113 = vunpack.c.l.b16 %v396
        %v1114 = vunpack.c.h.b16 %v396
        %v1115 = vunpack.c.l.b16 %v397
        %v1116 = vunpack.c.h.b16 %v397
        %v1117 = vunpack.c.l.b16 %v398
        %v1118 = vunpack.c.h.b16 %v398
        %v1119 = vunpack.c.l.b16 %v399
        %v1120 = vunpack.c.h.b16 %v399
        %v1121 = vunpack.c.l.b16 %v400
        %v1122 = vunpack.c.h.b16 %v400
        %v1123 = vunpack.c.l.b16 %v401
        %v1124 = vunpack.c.h.b16 %v401
        %v1125 = vunpack.c.l.b16 %v402
        %v1126 = vunpack.c.h.b16 %v402
        %v1127 = vunpack.c.l.b16 %v403
        %v1128 = vunpack.c.h.b16 %v403
        %v1129 = vunpack.c.l.b16 %v404
        %v1130 = vunpack.c.h.b16 %v404
        %v1131 = vunpack.c.l.b16 %v405
        %v1132 = vunpack.c.h.b16 %v405
        %v1133 = vunpack.c.l.b16 %v406
        %v1134 = vunpack.c.h.b16 %v406
        %v1135 = vunpack.c.l.b16 %v407
        %v1136 = vunpack.c.h.b16 %v407
        %v1137 = vunpack.c.l.b16 %v408
        %v1138 = vunpack.c.h.b16 %v408
        %v1139 = vunpack.c.l.b16 %v409
        %v1140 = vunpack.c.h.b16 %v409
        %v1141 = vunpack.c.l.b16 %v410
        %v1142 = vunpack.c.h.b16 %v410
        %v1143 = vunpack.c.l.b16 %v411
        %v1144 = vunpack.c.h.b16 %v411
        %v1145 = vunpack.c.l.b16 %v412
        %v1146 = vunpack.c.h.b16 %v412
        %v1147 = vunpack.c.l.b16 %v413
        %v1148 = vunpack.c.h.b16 %v413
        %v1149 = vunpack.c.l.b16 %v414
        %v1150 = vunpack.c.h.b16 %v414
        %v1151 = vunpack.c.l.b16 %v415
        %v1152 = vunpack.c.h.b16 %v415
        %v1153 = vunpack.c.l.b16 %v416
        %v1154 = vunpack.c.h.b16 %v416
        %v1155 = vunpack.c.l.b16 %v417
        %v1156 = vunpack.c.h.b16 %v417
        %v1157 = vunpack.c.l.b16 %v418
        %v1158 = vunpack.c.h.b16 %v418
        %v1159 = vunpack.c.l.b16 %v419
        %v1160 = vunpack.c.h.b16 %v419
        %v1161 = vunpack.c.l.b16 %v420
        %v1162 = vunpack.c.h.b16 %v420
        %v1163 = vunpack.c.l.b16 %v421
        %v1164 = vunpack.c.h.b16 %v421
        %v1165 = vunpack.c.l.b16 %v422
        %v1166 = vunpack.c.h.b16 %v422
        %v1167 = vunpack.c.l.b16 %v423
        %v1168 = vunpack.c.h.b16 %v423
        %v1169 = vunpack.c.l.b16 %v424
        %v1170 = vunpack.c.h.b16 %v424
        %v1171 = vunpack.c.l.b16 %v425
        %v1172 = vunpack.c.h.b16 %v425
        %v1173 = vunpack.c.l.b16 %v426
        %v1174 = vunpack.c.h.b16 %v426
        %v1175 = vunpack.c.l.b16 %v427
        %v1176 = vunpack.c.h.b16 %v427
        %v1177 = vunpack.c.l.b16 %v428
        %v1178 = vunpack.c.h.b16 %v428
        %v1179 = vunpack.c.l.b16 %v429
        %v1180 = vunpack.c.h.b16 %v429
        %v1181 = vunpack.c.l.b16 %v430
        %v1182 = vunpack.c.h.b16 %v430
        %v1183 = vunpack.c.l.b16 %v431
        %v1184 = vunpack.c.h.b16 %v431
        %v1185 = vunpack.c.l.b16 %v432
        %v1186 = vunpack.c.h.b16 %v432
        %v1187 = vunpack.c.l.b16 %v433
        %v1188 = vunpack.c.h.b16 %v433
        %v1189 = vunpack.c.l.b16 %v434
        %v1190 = vunpack.c.h.b16 %v434
        %v1191 = vunpack.c.l.b16 %v435
        %v1192 = vunpack.c.h.b16 %v435
        %v1193 = vunpack.c.l.b16 %v436
        %v1194 = vunpack.c.h.b16 %v436
        %v1195 = vunpack.c.l.b16 %v437
        %v1196 = vunpack.c.h.b16 %v437
        %v1197 = vunpack.c.l.b16 %v438
        %v1198 = vunpack.c.h.b16 %v438
        %v1199 = vunpack.c.l.b16 %v439
        %v1200 = vunpack.c.h.b16 %v439
        %v1201 = vunpack.c.l.b16 %v440
        %v1202 = vunpack.c.h.b16 %v440
        %v1203 = vunpack.c.l.b16 %v441
        %v1204 = vunpack.c.h.b16 %v441
        %v1205 = vunpack.c.l.b16 %v442
        %v1206 = vunpack.c.h.b16 %v442
        %v1207 = vunpack.c.l.b16 %v443
        %v1208 = vunpack.c.h.b16 %v443
        %v1209 = vunpack.c.l.b16 %v444
        %v1210 = vunpack.c.h.b16 %v444
        %v1211 = vunpack.c.l.b16 %v445
        %v1212 = vunpack.c.h.b16 %v445
        %v1213 = vunpack.c.l.b16 %v446
        %v1214 = vunpack.c.h.b16 %v446
        %v1215 = vunpack.c.l.b16 %v447
        %v1216 = vunpack.c.h.b16 %v447
        %v1217 = vunpack.c.l.b16 %v448
        %v1218 = vunpack.c.h.b16 %v448
        %v1219 = vunpack.c.l.b16 %v449
        %v1220 = vunpack.c.h.b16 %v449
        %v1221 = vunpack.c.l.b16 %v450
        %v1222 = vunpack.c.h.b16 %v450
        %v1223 = vunpack.c.l.b16 %v451
        %v1224 = vunpack.c.h.b16 %v451
        %v1225 = vunpack.c.l.b16 %v452
        %v1226 = vunpack.c.h.b16 %v452
        %v1227 = vunpack.c.l.b16 %v453
        %v1228 = vunpack.c.h.b16 %v453
        %v1229 = vunpack.c.l.b16 %v454
        %v1230 = vunpack.c.h.b16 %v454
        %v1231 = vunpack.c.l.b16 %v455
        %v1232 = vunpack.c.h.b16 %v455
        %v1233 = vunpack.c.l.b16 %v456
        %v1234 = vunpack.c.h.b16 %v456
        %v1235 = vunpack.c.l.b16 %v457
        %v1236 = vunpack.c.h.b16 %v457
        %v1237 = vunpack.c.l.b16 %v458
        %v1238 = vunpack.c.h.b16 %v458
        %v1239 = vunpack.c.l.b16 %v459
        %v1240 = vunpack.c.h.b16 %v459
        %v1241 = vunpack.c.l.b16 %v460
        %v1242 = vunpack.c.h.b16 %v460
        %v1243 = vunpack.c.l.b16 %v461
        %v1244 = vunpack.c.h.b16 %v461
        %v1245 = vunpack.c.l.b16 %v462
        %v1246 = vunpack.c.h.b16 %v462
        %v1247 = vunpack.c.l.b16 %v463
        %v1248 = vunpack.c.h.b16 %v463
        %v1249 = vunpack.c.l.b16 %v464
        %v1250 = vunpack.c.h.b16 %v464
        %v1251 = vunpack.c.l.b16 %v465
        %v1252 = vunpack.c.h.b16 %v465
        %v1253 = vunpack.c.l.b16 %v466
        %v1254 = vunpack.c.h.b16 %v466
        %v1255 = vunpack.c.l.b16 %v467
        %v1256 = vunpack.c.h.b16 %v467
        %v1257 = vunpack.c.l.b16 %v468
        %v1258 = vunpack.c.h.b16 %v468
        %v1259 = vunpack.c.l.b16 %v469
        %v1260 = vunpack.c.h.b16 %v469
        %v1261 = vunpack.c.l.b16 %v470
        %v1262 = vunpack.c.h.b16 %v470
        %v1263 = vunpack.c.l.b16 %v471
        %v1264 = vunpack.c.h.b16 %v471
        %v1265 = vunpack.c.l.b16 %v472
        %v1266 = vunpack.c.h.b16 %v472
        %v1267 = vunpack.c.l.b16 %v473
        %v1268 = vunpack.c.h.b16 %v473
        %v1269 = vunpack.c.l.b16 %v474
        %v1270 = vunpack.c.h.b16 %v474
        %v1271 = vunpack.c.l.b16 %v475
        %v1272 = vunpack.c.h.b16 %v475
        %v1273 = vunpack.c.l.b16 %v476
        %v1274 = vunpack.c.h.b16 %v476
        %v1275 = vunpack.c.l.b16 %v477
        %v1276 = vunpack.c.h.b16 %v477
        %v1277 = vunpack.c.l.b16 %v478
        %v1278 = vunpack.c.h.b16 %v478
        %v1279 = vunpack.c.l.b16 %v479
        %v1280 = vunpack.c.h.b16 %v479
        %v1281 = vunpack.c.l.b16 %v480
        %v1282 = vunpack.c.h.b16 %v480
        %v1283 = vunpack.c.l.b16 %v481
        %v1284 = vunpack.c.h.b16 %v481
        %v1285 = vunpack.c.l.b16 %v482
        %v1286 = vunpack.c.h.b16 %v482
        %v1287 = vunpack.c.l.b16 %v483
        %v1288 = vunpack.c.h.b16 %v483
        %v1289 = vunpack.c.l.b16 %v484
        %v1290 = vunpack.c.h.b16 %v484
        %v1291 = vunpack.c.l.b16 %v485
        %v1292 = vunpack.c.h.b16 %v485
        %v1293 = vunpack.c.l.b16 %v486
        %v1294 = vunpack.c.h.b16 %v486
        %v1295 = vunpack.c.l.b16 %v487
        %v1296 = vunpack.c.h.b16 %v487
        %v1297 = vunpack.c.l.b16 %v488
        %v1298 = vunpack.c.h.b16 %v488
        %v1299 = vunpack.c.l.b16 %v489
        %v1300 = vunpack.c.h.b16 %v489
        %v1301 = vunpack.c.l.b16 %v490
        %v1302 = vunpack.c.h.b16 %v490
        %v1303 = vunpack.c.l.b16 %v491
        %v1304 = vunpack.c.h.b16 %v491
        %v1305 = vunpack.c.l.b16 %v492
        %v1306 = vunpack.c.h.b16 %v492
        %v1307 = vunpack.c.l.b16 %v493
        %v1308 = vunpack.c.h.b16 %v493
        %v1309 = vunpack.c.l.b16 %v494
        %v1310 = vunpack.c.h.b16 %v494
        %v1311 = vunpack.c.l.b16 %v495
        %v1312 = vunpack.c.h.b16 %v495
        %v1313 = vunpack.c.l.b16 %v496
        %v1314 = vunpack.c.h.b16 %v496
        %v1315 = vunpack.c.l.b16 %v497
        %v1316 = vunpack.c.h.b16 %v497
        %v1317 = vunpack.c.l.b16 %v498
        %v1318 = vunpack.c.h.b16 %v498
        %v1319 = vunpack.c.l.b16 %v499
        %v1320 = vunpack.c.h.b16 %v499
        %v1321 = vunpack.c.l.b16 %v500
        %v1322 = vunpack.c.h.b16 %v500
        %v1323 = vunpack.c.l.b16 %v501
        %v1324 = vunpack.c.h.b16 %v501
        %v1325 = vunpack.c.l.b16 %v502
        %v1326 = vunpack.c.h.b16 %v502
        %v1327 = vunpack.c.l.b16 %v503
        %v1328 = vunpack.c.h.b16 %v503
        %v1329 = vunpack.c.l.b16 %v504
        %v1330 = vunpack.c.h.b16 %v504
        %v1331 = vunpack.c.l.b16 %v505
        %v1332 = vunpack.c.h.b16 %v505
        %v1333 = vunpack.c.l.b16 %v506
        %v1334 = vunpack.c.h.b16 %v506
        %v1335 = vunpack.c.l.b16 %v507
        %v1336 = vunpack.c.h.b16 %v507
        %v1337 = vunpack.c.l.b16 %v508
        %v1338 = vunpack.c.h.b16 %v508
        %v1339 = vpack.c.b16 %v829, %v827
        %v1340 = vpack.c.b16 %v830, %v828
        %v1341 = vpack.c.b16 %v833, %v831
        %v1342 = vpack.c.b16 %v834, %v832
        %v1343 = vpack.c.b16 %v837, %v835
        %v1344 = vpack.c.b16 %v838, %v836
        %v1345 = vpack.c.b16 %v841, %v839
        %v1346 = vpack.c.b16 %v842, %v840
        %v1347 = vpack.c.b16 %v845, %v843
        %v1348 = vpack.c.b16 %v846, %v844
        %v1349 = vpack.c.b16 %v849, %v847
        %v1350 = vpack.c.b16 %v850, %v848
        %v1351 = vpack.c.b16 %v853, %v851
        %v1352 = vpack.c.b16 %v854, %v852
        %v1353 = vpack.c.b16 %v857, %v855
        %v1354 = vpack.c.b16 %v858, %v856
        %v1355 = vpack.c.b16 %v861, %v859
        %v1356 = vpack.c.b16 %v862, %v860
        %v1357 = vpack.c.b16 %v865, %v863
        %v1358 = vpack.c.b16 %v866, %v864
        %v1359 = vpack.c.b16 %v869, %v867
        %v1360 = vpack.c.b16 %v870, %v868
        %v1361 = vpack.c.b16 %v873, %v871
        %v1362 = vpack.c.b16 %v874, %v872
        %v1363 = vpack.c.b16 %v877, %v875
        %v1364 = vpack.c.b16 %v878, %v876
        %v1365 = vpack.c.b16 %v881, %v879
        %v1366 = vpack.c.b16 %v882, %v880
        %v1367 = vpack.c.b16 %v885, %v883
        %v1368 = vpack.c.b16 %v886, %v884
        %v1369 = vpack.c.b16 %v889, %v887
        %v1370 = vpack.c.b16 %v890, %v888
        %v1371 = vpack.c.b16 %v893, %v891
        %v1372 = vpack.c.b16 %v894, %v892
        %v1373 = vpack.c.b16 %v897, %v895
        %v1374 = vpack.c.b16 %v898, %v896
        %v1375 = vpack.c.b16 %v901, %v899
        %v1376 = vpack.c.b16 %v902, %v900
        %v1377 = vpack.c.b16 %v905, %v903
        %v1378 = vpack.c.b16 %v906, %v904
        %v1379 = vpack.c.b16 %v909, %v907
        %v1380 = vpack.c.b16 %v910, %v908
        %v1381 = vpack.c.b16 %v913, %v911
        %v1382 = vpack.c.b16 %v914, %v912
        %v1383 = vpack.c.b16 %v917, %v915
        %v1384 = vpack.c.b16 %v918, %v916
        %v1385 = vpack.c.b16 %v921, %v919
        %v1386 = vpack.c.b16 %v922, %v920
        %v1387 = vpack.c.b16 %v925, %v923
        %v1388 = vpack.c.b16 %v926, %v924
        %v1389 = vpack.c.b16 %v929, %v927
        %v1390 = vpack.c.b16 %v930, %v928
        %v1391 = vpack.c.b16 %v933, %v931
        %v1392 = vpack.c.b16 %v934, %v932
        %v1393 = vpack.c.b16 %v937, %v935
        %v1394 = vpack.c.b16 %v938, %v936
        %v1395 = vpack.c.b16 %v941, %v939
        %v1396 = vpack.c.b16 %v942, %v940
        %v1397 = vpack.c.b16 %v945, %v943
        %v1398 = vpack.c.b16 %v946, %v944
        %v1399 = vpack.c.b16 %v949, %v947
        %v1400 = vpack.c.b16 %v950, %v948
        %v1401 = vpack.c.b16 %v953, %v951
        %v1402 = vpack.c.b16 %v954, %v952
        %v1403 = vpack.c.b16 %v957, %v955
        %v1404 = vpack.c.b16 %v958, %v956
        %v1405 = vpack.c.b16 %v961, %v959
        %v1406 = vpack.c.b16 %v962, %v960
        %v1407 = vpack.c.b16 %v965, %v963
        %v1408 = vpack.c.b16 %v966, %v964
        %v1409 = vpack.c.b16 %v969, %v967
        %v1410 = vpack.c.b16 %v970, %v968
        %v1411 = vpack.c.b16 %v973, %v971
        %v1412 = vpack.c.b16 %v974, %v972
        %v1413 = vpack.c.b16 %v977, %v975
        %v1414 = vpack.c.b16 %v978, %v976
        %v1415 = vpack.c.b16 %v981, %v979
        %v1416 = vpack.c.b16 %v982, %v980
        %v1417 = vpack.c.b16 %v985, %v983
        %v1418 = vpack.c.b16 %v986, %v984
        %v1419 = vpack.c.b16 %v989, %v987
        %v1420 = vpack.c.b16 %v990, %v988
        %v1421 = vpack.c.b16 %v993, %v991
        %v1422 = vpack.c.b16 %v994, %v992
        %v1423 = vpack.c.b16 %v997, %v995
        %v1424 = vpack.c.b16 %v998, %v996
        %v1425 = vpack.c.b16 %v1001, %v999
        %v1426 = vpack.c.b16 %v1002, %v1000
        %v1427 = vpack.c.b16 %v1005, %v1003
        %v1428 = vpack.c.b16 %v1006, %v1004
        %v1429 = vpack.c.b16 %v1009, %v1007
        %v1430 = vpack.c.b16 %v1010, %v1008
        %v1431 = vpack.c.b16 %v1013, %v1011
        %v1432 = vpack.c.b16 %v1014, %v1012
        %v1433 = vpack.c.b16 %v1017, %v1015
        %v1434 = vpack.c.b16 %v1018, %v1016
        %v1435 = vpack.c.b16 %v1021, %v1019
        %v1436 = vpack.c.b16 %v1022, %v1020
        %v1437 = vpack.c.b16 %v1025, %v1023
        %v1438 = vpack.c.b16 %v1026, %v1024
        %v1439 = vpack.c.b16 %v1029, %v1027
        %v1440 = vpack.c.b16 %v1030, %v1028
        %v1441 = vpack.c.b16 %v1033, %v1031
        %v1442 = vpack.c.b16 %v1034, %v1032
        %v1443 = vpack.c.b16 %v1037, %v1035
        %v1444 = vpack.c.b16 %v1038, %v1036
        %v1445 = vpack.c.b16 %v1041, %v1039
        %v1446 = vpack.c.b16 %v1042, %v1040
        %v1447 = vpack.c.b16 %v1045, %v1043
        %v1448 = vpack.c.b16 %v1046, %v1044
        %v1449 = vpack.c.b16 %v1049, %v1047
        %v1450 = vpack.c.b16 %v1050, %v1048
        %v1451 = vpack.c.b16 %v1053, %v1051
        %v1452 = vpack.c.b16 %v1054, %v1052
        %v1453 = vpack.c.b16 %v1057, %v1055
        %v1454 = vpack.c.b16 %v1058, %v1056
        %v1455 = vpack.c.b16 %v1061, %v1059
        %v1456 = vpack.c.b16 %v1062, %v1060
        %v1457 = vpack.c.b16 %v1065, %v1063
        %v1458 = vpack.c.b16 %v1066, %v1064
        %v1459 = vpack.c.b16 %v1069, %v1067
        %v1460 = vpack.c.b16 %v1070, %v1068
        %v1461 = vpack.c.b16 %v1073, %v1071
        %v1462 = vpack.c.b16 %v1074, %v1072
        %v1463 = vpack.c.b16 %v1077, %v1075
        %v1464 = vpack.c.b16 %v1078, %v1076
        %v1465 = vpack.c.b16 %v1081, %v1079
        %v1466 = vpack.c.b16 %v1082, %v1080
        %v1467 = vpack.c.b16 %v1085, %v1083
        %v1468 = vpack.c.b16 %v1086, %v1084
        %v1469 = vpack.c.b16 %v1089, %v1087
        %v1470 = vpack.c.b16 %v1090, %v1088
        %v1471 = vpack.c.b16 %v1093, %v1091
        %v1472 = vpack.c.b16 %v1094, %v1092
        %v1473 = vpack.c.b16 %v1097, %v1095
        %v1474 = vpack.c.b16 %v1098, %v1096
        %v1475 = vpack.c.b16 %v1101, %v1099
        %v1476 = vpack.c.b16 %v1102, %v1100
        %v1477 = vpack.c.b16 %v1105, %v1103
        %v1478 = vpack.c.b16 %v1106, %v1104
        %v1479 = vpack.c.b16 %v1109, %v1107
        %v1480 = vpack.c.b16 %v1110, %v1108
        %v1481 = vpack.c.b16 %v1113, %v1111
        %v1482 = vpack.c.b16 %v1114, %v1112
        %v1483 = vpack.c.b16 %v1117, %v1115
        %v1484 = vpack.c.b16 %v1118, %v1116
        %v1485 = vpack.c.b16 %v1121, %v1119
        %v1486 = vpack.c.b16 %v1122, %v1120
        %v1487 = vpack.c.b16 %v1125, %v1123
        %v1488 = vpack.c.b16 %v1126, %v1124
        %v1489 = vpack.c.b16 %v1129, %v1127
        %v1490 = vpack.c.b16 %v1130, %v1128
        %v1491 = vpack.c.b16 %v1133, %v1131
        %v1492 = vpack.c.b16 %v1134, %v1132
        %v1493 = vpack.c.b16 %v1137, %v1135
        %v1494 = vpack.c.b16 %v1138, %v1136
        %v1495 = vpack.c.b16 %v1141, %v1139
        %v1496 = vpack.c.b16 %v1142, %v1140
        %v1497 = vpack.c.b16 %v1145, %v1143
        %v1498 = vpack.c.b16 %v1146, %v1144
        %v1499 = vpack.c.b16 %v1149, %v1147
        %v1500 = vpack.c.b16 %v1150, %v1148
        %v1501 = vpack.c.b16 %v1153, %v1151
        %v1502 = vpack.c.b16 %v1154, %v1152
        %v1503 = vpack.c.b16 %v1157, %v1155
        %v1504 = vpack.c.b16 %v1158, %v1156
        %v1505 = vpack.c.b16 %v1161, %v1159
        %v1506 = vpack.c.b16 %v1162, %v1160
        %v1507 = vpack.c.b16 %v1165, %v1163
        %v1508 = vpack.c.b16 %v1166, %v1164
        %v1509 = vpack.c.b16 %v1169, %v1167
        %v1510 = vpack.c.b16 %v1170, %v1168
        %v1511 = vpack.c.b16 %v1173, %v1171
        %v1512 = vpack.c.b16 %v1174, %v1172
        %v1513 = vpack.c.b16 %v1177, %v1175
        %v1514 = vpack.c.b16 %v1178, %v1176
        %v1515 = vpack.c.b16 %v1181, %v1179
        %v1516 = vpack.c.b16 %v1182, %v1180
        %v1517 = vpack.c.b16 %v1185, %v1183
        %v1518 = vpack.c.b16 %v1186, %v1184
        %v1519 = vpack.c.b16 %v1189, %v1187
        %v1520 = vpack.c.b16 %v1190, %v1188
        %v1521 = vpack.c.b16 %v1193, %v1191
        %v1522 = vpack.c.b16 %v1194, %v1192
        %v1523 = vpack.c.b16 %v1197, %v1195
        %v1524 = vpack.c.b16 %v1198, %v1196
        %v1525 = vpack.c.b16 %v1201, %v1199
        %v1526 = vpack.c.b16 %v1202, %v1200
        %v1527 = vpack.c.b16 %v1205, %v1203
        %v1528 = vpack.c.b16 %v1206, %v1204
        %v1529 = vpack.c.b16 %v1209, %v1207
        %v1530 = vpack.c.b16 %v1210, %v1208
        %v1531 = vpack.c.b16 %v1213, %v1211
        %v1532 = vpack.c.b16 %v1214, %v1212
        %v1533 = vpack.c.b16 %v1217, %v1215
        %v1534 = vpack.c.b16 %v1218, %v1216
        %v1535 = vpack.c.b16 %v1221, %v1219
        %v1536 = vpack.c.b16 %v1222, %v1220
        %v1537 = vpack.c.b16 %v1225, %v1223
        %v1538 = vpack.c.b16 %v1226, %v1224
        %v1539 = vpack.c.b16 %v1229, %v1227
        %v1540 = vpack.c.b16 %v1230, %v1228
        %v1541 = vpack.c.b16 %v1233, %v1231
        %v1542 = vpack.c.b16 %v1234, %v1232
        %v1543 = vpack.c.b16 %v1237, %v1235
        %v1544 = vpack.c.b16 %v1238, %v1236
        %v1545 = vpack.c.b16 %v1241, %v1239
        %v1546 = vpack.c.b16 %v1242, %v1240
        %v1547 = vpack.c.b16 %v1245, %v1243
        %v1548 = vpack.c.b16 %v1246, %v1244
        %v1549 = vpack.c.b16 %v1249, %v1247
        %v1550 = vpack.c.b16 %v1250, %v1248
        %v1551 = vpack.c.b16 %v1253, %v1251
        %v1552 = vpack.c.b16 %v1254, %v1252
        %v1553 = vpack.c.b16 %v1257, %v1255
        %v1554 = vpack.c.b16 %v1258, %v1256
        %v1555 = vpack.c.b16 %v1261, %v1259
        %v1556 = vpack.c.b16 %v1262, %v1260
        %v1557 = vpack.c.b16 %v1265, %v1263
        %v1558 = vpack.c.b16 %v1266, %v1264
        %v1559 = vpack.c.b16 %v1269, %v1267
        %v1560 = vpack.c.b16 %v1270, %v1268
        %v1561 = vpack.c.b16 %v1273, %v1271
        %v1562 = vpack.c.b16 %v1274, %v1272
        %v1563 = vpack.c.b16 %v1277, %v1275
        %v1564 = vpack.c.b16 %v1278, %v1276
        %v1565 = vpack.c.b16 %v1281, %v1279
        %v1566 = vpack.c.b16 %v1282, %v1280
        %v1567 = vpack.c.b16 %v1285, %v1283
        %v1568 = vpack.c.b16 %v1286, %v1284
        %v1569 = vpack.c.b16 %v1289, %v1287
        %v1570 = vpack.c.b16 %v1290, %v1288
        %v1571 = vpack.c.b16 %v1293, %v1291
        %v1572 = vpack.c.b16 %v1294, %v1292
        %v1573 = vpack.c.b16 %v1297, %v1295
        %v1574 = vpack.c.b16 %v1298, %v1296
        %v1575 = vpack.c.b16 %v1301, %v1299
        %v1576 = vpack.c.b16 %v1302, %v1300
        %v1577 = vpack.c.b16 %v1305, %v1303
        %v1578 = vpack.c.b16 %v1306, %v1304
        %v1579 = vpack.c.b16 %v1309, %v1307
        %v1580 = vpack.c.b16 %v1310, %v1308
        %v1581 = vpack.c.b16 %v1313, %v1311
        %v1582 = vpack.c.b16 %v1314, %v1312
        %v1583 = vpack.c.b16 %v1317, %v1315
        %v1584 = vpack.c.b16 %v1318, %v1316
        %v1585 = vpack.c.b16 %v1321, %v1319
        %v1586 = vpack.c.b16 %v1322, %v1320
        %v1587 = vpack.c.b16 %v1325, %v1323
        %v1588 = vpack.c.b16 %v1326, %v1324
        %v1589 = vpack.c.b16 %v1329, %v1327
        %v1590 = vpack.c.b16 %v1330, %v1328
        %v1591 = vpack.c.b16 %v1333, %v1331
        %v1592 = vpack.c.b16 %v1334, %v1332
        %v1593 = vpack.c.b16 %v1337, %v1335
        %v1594 = vpack.c.b16 %v1338, %v1336
        %1851 = vmatpush.bf16.msra.mxu0 %v1353
        %1852 = vmatpush.bf16.msra.mxu0 %v1351
        %1853 = vmatpush.bf16.msra.mxu0 %v1349
        %1854 = vmatpush.bf16.msra.mxu0 %v1347
        %1855 = vmatpush.bf16.msra.mxu0 %v1345
        %1856 = vmatpush.bf16.msra.mxu0 %v1343
        %1857 = vmatpush.bf16.msra.mxu0 %v1341
        %1858 = vmatpush.bf16.msra.mxu0 %v1339
        %1859 = vmatmul.bf16.gmra.mxu0 %v539
        %v1860 = vpop.f32.mrf.mxu0
        %v1861 = vadd.f32 %v511, %v1860
        %v1862 = vpop.f32.mrf.mxu0
        %1863 = vdwg.mxu0
        %1864 = vmatpush.bf16.msra.mxu0 %v1369
        %1865 = vmatpush.bf16.msra.mxu0 %v1367
        %1866 = vmatpush.bf16.msra.mxu0 %v1365
        %1867 = vmatpush.bf16.msra.mxu0 %v1363
        %1868 = vmatpush.bf16.msra.mxu0 %v1361
        %1869 = vmatpush.bf16.msra.mxu0 %v1359
        %1870 = vmatpush.bf16.msra.mxu0 %v1357
        %1871 = vmatpush.bf16.msra.mxu0 %v1355
        %1872 = vmatmul.bf16.gmra.mxu0 %v540
        %v1873 = vpop.f32.mrf.mxu0
        %v1874 = vadd.f32 %v1861, %v1873
        %v1875 = vpop.f32.mrf.mxu0
        %1876 = vdwg.mxu0
        %1877 = vmatpush.bf16.msra.mxu0 %v1385
        %1878 = vmatpush.bf16.msra.mxu0 %v1383
        %1879 = vmatpush.bf16.msra.mxu0 %v1381
        %1880 = vmatpush.bf16.msra.mxu0 %v1379
        %1881 = vmatpush.bf16.msra.mxu0 %v1377
        %1882 = vmatpush.bf16.msra.mxu0 %v1375
        %1883 = vmatpush.bf16.msra.mxu0 %v1373
        %1884 = vmatpush.bf16.msra.mxu0 %v1371
        %1885 = vmatmul.bf16.gmra.mxu0 %v541
        %v1886 = vpop.f32.mrf.mxu0
        %v1887 = vadd.f32 %v1874, %v1886
        %v1888 = vpop.f32.mrf.mxu0
        %1889 = vdwg.mxu0
        %1890 = vmatpush.bf16.msra.mxu0 %v1401
        %1891 = vmatpush.bf16.msra.mxu0 %v1399
        %1892 = vmatpush.bf16.msra.mxu0 %v1397
        %1893 = vmatpush.bf16.msra.mxu0 %v1395
        %1894 = vmatpush.bf16.msra.mxu0 %v1393
        %1895 = vmatpush.bf16.msra.mxu0 %v1391
        %1896 = vmatpush.bf16.msra.mxu0 %v1389
        %1897 = vmatpush.bf16.msra.mxu0 %v1387
        %1898 = vmatmul.bf16.gmra.mxu0 %v542
        %v1899 = vpop.f32.mrf.mxu0
        %v1900 = vadd.f32 %v1887, %v1899
        %v1901 = vpop.f32.mrf.mxu0
        %1902 = vdwg.mxu0
        %1903 = vmatpush.bf16.msra.mxu0 %v1417
        %1904 = vmatpush.bf16.msra.mxu0 %v1415
        %1905 = vmatpush.bf16.msra.mxu0 %v1413
        %1906 = vmatpush.bf16.msra.mxu0 %v1411
        %1907 = vmatpush.bf16.msra.mxu0 %v1409
        %1908 = vmatpush.bf16.msra.mxu0 %v1407
        %1909 = vmatpush.bf16.msra.mxu0 %v1405
        %1910 = vmatpush.bf16.msra.mxu0 %v1403
        %1911 = vmatmul.bf16.gmra.mxu0 %v543
        %v1912 = vpop.f32.mrf.mxu0
        %v1913 = vadd.f32 %v1900, %v1912
        %v1914 = vpop.f32.mrf.mxu0
        %1915 = vdwg.mxu0
        %1916 = vmatpush.bf16.msra.mxu0 %v1433
        %1917 = vmatpush.bf16.msra.mxu0 %v1431
        %1918 = vmatpush.bf16.msra.mxu0 %v1429
        %1919 = vmatpush.bf16.msra.mxu0 %v1427
        %1920 = vmatpush.bf16.msra.mxu0 %v1425
        %1921 = vmatpush.bf16.msra.mxu0 %v1423
        %1922 = vmatpush.bf16.msra.mxu0 %v1421
        %1923 = vmatpush.bf16.msra.mxu0 %v1419
        %1924 = vmatmul.bf16.gmra.mxu0 %v544
        %v1925 = vpop.f32.mrf.mxu0
        %v1926 = vadd.f32 %v1913, %v1925
        %v1927 = vpop.f32.mrf.mxu0
        %1928 = vdwg.mxu0
        %1929 = vmatpush.bf16.msra.mxu0 %v1449
        %1930 = vmatpush.bf16.msra.mxu0 %v1447
        %1931 = vmatpush.bf16.msra.mxu0 %v1445
        %1932 = vmatpush.bf16.msra.mxu0 %v1443
        %1933 = vmatpush.bf16.msra.mxu0 %v1441
        %1934 = vmatpush.bf16.msra.mxu0 %v1439
        %1935 = vmatpush.bf16.msra.mxu0 %v1437
        %1936 = vmatpush.bf16.msra.mxu0 %v1435
        %1937 = vmatmul.bf16.gmra.mxu0 %v545
        %v1938 = vpop.f32.mrf.mxu0
        %v1939 = vadd.f32 %v1926, %v1938
        %v1940 = vpop.f32.mrf.mxu0
        %1941 = vdwg.mxu0
        %1942 = vmatpush.bf16.msra.mxu0 %v1465
        %1943 = vmatpush.bf16.msra.mxu0 %v1463
        %1944 = vmatpush.bf16.msra.mxu0 %v1461
        %1945 = vmatpush.bf16.msra.mxu0 %v1459
        %1946 = vmatpush.bf16.msra.mxu0 %v1457
        %1947 = vmatpush.bf16.msra.mxu0 %v1455
        %1948 = vmatpush.bf16.msra.mxu0 %v1453
        %1949 = vmatpush.bf16.msra.mxu0 %v1451
        %1950 = vmatmul.bf16.gmra.mxu0 %v546
        %v1951 = vpop.f32.mrf.mxu0
        %v1952 = vadd.f32 %v1939, %v1951
        %v1953 = vpop.f32.mrf.mxu0
        %1954 = vdwg.mxu0
        %1955 = vmatpush.bf16.msra.mxu0 %v1481
        %1956 = vmatpush.bf16.msra.mxu0 %v1479
        %1957 = vmatpush.bf16.msra.mxu0 %v1477
        %1958 = vmatpush.bf16.msra.mxu0 %v1475
        %1959 = vmatpush.bf16.msra.mxu0 %v1473
        %1960 = vmatpush.bf16.msra.mxu0 %v1471
        %1961 = vmatpush.bf16.msra.mxu0 %v1469
        %1962 = vmatpush.bf16.msra.mxu0 %v1467
        %1963 = vmatmul.bf16.gmra.mxu0 %v547
        %v1964 = vpop.f32.mrf.mxu0
        %v1965 = vadd.f32 %v1952, %v1964
        %v1966 = vpop.f32.mrf.mxu0
        %1967 = vdwg.mxu0
        %1968 = vmatpush.bf16.msra.mxu0 %v1497
        %1969 = vmatpush.bf16.msra.mxu0 %v1495
        %1970 = vmatpush.bf16.msra.mxu0 %v1493
        %1971 = vmatpush.bf16.msra.mxu0 %v1491
        %1972 = vmatpush.bf16.msra.mxu0 %v1489
        %1973 = vmatpush.bf16.msra.mxu0 %v1487
        %1974 = vmatpush.bf16.msra.mxu0 %v1485
        %1975 = vmatpush.bf16.msra.mxu0 %v1483
        %1976 = vmatmul.bf16.gmra.mxu0 %v548
        %v1977 = vpop.f32.mrf.mxu0
        %v1978 = vadd.f32 %v1965, %v1977
        %v1979 = vpop.f32.mrf.mxu0
        %1980 = vdwg.mxu0
        %1981 = vmatpush.bf16.msra.mxu0 %v1513
        %1982 = vmatpush.bf16.msra.mxu0 %v1511
        %1983 = vmatpush.bf16.msra.mxu0 %v1509
        %1984 = vmatpush.bf16.msra.mxu0 %v1507
        %1985 = vmatpush.bf16.msra.mxu0 %v1505
        %1986 = vmatpush.bf16.msra.mxu0 %v1503
        %1987 = vmatpush.bf16.msra.mxu0 %v1501
        %1988 = vmatpush.bf16.msra.mxu0 %v1499
        %1989 = vmatmul.bf16.gmra.mxu0 %v549
        %v1990 = vpop.f32.mrf.mxu0
        %v1991 = vadd.f32 %v1978, %v1990
        %v1992 = vpop.f32.mrf.mxu0
        %1993 = vdwg.mxu0
        %1994 = vmatpush.bf16.msra.mxu0 %v1529
        %1995 = vmatpush.bf16.msra.mxu0 %v1527
        %1996 = vmatpush.bf16.msra.mxu0 %v1525
        %1997 = vmatpush.bf16.msra.mxu0 %v1523
        %1998 = vmatpush.bf16.msra.mxu0 %v1521
        %1999 = vmatpush.bf16.msra.mxu0 %v1519
        %2000 = vmatpush.bf16.msra.mxu0 %v1517
        %2001 = vmatpush.bf16.msra.mxu0 %v1515
        %2002 = vmatmul.bf16.gmra.mxu0 %v550
        %v2003 = vpop.f32.mrf.mxu0
        %v2004 = vadd.f32 %v1991, %v2003
        %v2005 = vpop.f32.mrf.mxu0
        %2006 = vdwg.mxu0
        %2007 = vmatpush.bf16.msra.mxu0 %v1545
        %2008 = vmatpush.bf16.msra.mxu0 %v1543
        %2009 = vmatpush.bf16.msra.mxu0 %v1541
        %2010 = vmatpush.bf16.msra.mxu0 %v1539
        %2011 = vmatpush.bf16.msra.mxu0 %v1537
        %2012 = vmatpush.bf16.msra.mxu0 %v1535
        %2013 = vmatpush.bf16.msra.mxu0 %v1533
        %2014 = vmatpush.bf16.msra.mxu0 %v1531
        %2015 = vmatmul.bf16.gmra.mxu0 %v551
        %v2016 = vpop.f32.mrf.mxu0
        %v2017 = vadd.f32 %v2004, %v2016
        %v2018 = vpop.f32.mrf.mxu0
        %2019 = vdwg.mxu0
        %2020 = vmatpush.bf16.msra.mxu0 %v1561
        %2021 = vmatpush.bf16.msra.mxu0 %v1559
        %2022 = vmatpush.bf16.msra.mxu0 %v1557
        %2023 = vmatpush.bf16.msra.mxu0 %v1555
        %2024 = vmatpush.bf16.msra.mxu0 %v1553
        %2025 = vmatpush.bf16.msra.mxu0 %v1551
        %2026 = vmatpush.bf16.msra.mxu0 %v1549
        %2027 = vmatpush.bf16.msra.mxu0 %v1547
        %2028 = vmatmul.bf16.gmra.mxu0 %v552
        %v2029 = vpop.f32.mrf.mxu0
        %v2030 = vadd.f32 %v2017, %v2029
        %v2031 = vpop.f32.mrf.mxu0
        %2032 = vdwg.mxu0
        %2033 = vmatpush.bf16.msra.mxu0 %v1577
        %2034 = vmatpush.bf16.msra.mxu0 %v1575
        %2035 = vmatpush.bf16.msra.mxu0 %v1573
        %2036 = vmatpush.bf16.msra.mxu0 %v1571
        %2037 = vmatpush.bf16.msra.mxu0 %v1569
        %2038 = vmatpush.bf16.msra.mxu0 %v1567
        %2039 = vmatpush.bf16.msra.mxu0 %v1565
        %2040 = vmatpush.bf16.msra.mxu0 %v1563
        %2041 = vmatmul.bf16.gmra.mxu0 %v553
        %v2042 = vpop.f32.mrf.mxu0
        %v2043 = vadd.f32 %v2030, %v2042
        %v2044 = vpop.f32.mrf.mxu0
        %2045 = vdwg.mxu0
        %2046 = vmatpush.bf16.msra.mxu0 %v1593
        %2047 = vmatpush.bf16.msra.mxu0 %v1591
        %2048 = vmatpush.bf16.msra.mxu0 %v1589
        %2049 = vmatpush.bf16.msra.mxu0 %v1587
        %2050 = vmatpush.bf16.msra.mxu0 %v1585
        %2051 = vmatpush.bf16.msra.mxu0 %v1583
        %2052 = vmatpush.bf16.msra.mxu0 %v1581
        %2053 = vmatpush.bf16.msra.mxu0 %v1579
        %2054 = vmatmul.bf16.gmra.mxu0 %v554
        %v2055 = vpop.f32.mrf.mxu0
        %v2056 = vadd.f32 %v2043, %v2055
        %v2057 = vpop.f32.mrf.mxu0
        %2058 = vdwg.mxu0
        %2059 = vmatpush.bf16.msra.mxu0 %v1354
        %2060 = vmatpush.bf16.msra.mxu0 %v1352
        %2061 = vmatpush.bf16.msra.mxu0 %v1350
        %2062 = vmatpush.bf16.msra.mxu0 %v1348
        %2063 = vmatpush.bf16.msra.mxu0 %v1346
        %2064 = vmatpush.bf16.msra.mxu0 %v1344
        %2065 = vmatpush.bf16.msra.mxu0 %v1342
        %2066 = vmatpush.bf16.msra.mxu0 %v1340
        %2067 = vmatmul.bf16.gmra.mxu0 %v539
        %v2068 = vpop.f32.mrf.mxu0
        %v2069 = vadd.f32 %v512, %v2068
        %v2070 = vpop.f32.mrf.mxu0
        %2071 = vdwg.mxu0
        %2072 = vmatpush.bf16.msra.mxu0 %v1370
        %2073 = vmatpush.bf16.msra.mxu0 %v1368
        %2074 = vmatpush.bf16.msra.mxu0 %v1366
        %2075 = vmatpush.bf16.msra.mxu0 %v1364
        %2076 = vmatpush.bf16.msra.mxu0 %v1362
        %2077 = vmatpush.bf16.msra.mxu0 %v1360
        %2078 = vmatpush.bf16.msra.mxu0 %v1358
        %2079 = vmatpush.bf16.msra.mxu0 %v1356
        %2080 = vmatmul.bf16.gmra.mxu0 %v540
        %v2081 = vpop.f32.mrf.mxu0
        %v2082 = vadd.f32 %v2069, %v2081
        %v2083 = vpop.f32.mrf.mxu0
        %2084 = vdwg.mxu0
        %2085 = vmatpush.bf16.msra.mxu0 %v1386
        %2086 = vmatpush.bf16.msra.mxu0 %v1384
        %2087 = vmatpush.bf16.msra.mxu0 %v1382
        %2088 = vmatpush.bf16.msra.mxu0 %v1380
        %2089 = vmatpush.bf16.msra.mxu0 %v1378
        %2090 = vmatpush.bf16.msra.mxu0 %v1376
        %2091 = vmatpush.bf16.msra.mxu0 %v1374
        %2092 = vmatpush.bf16.msra.mxu0 %v1372
        %2093 = vmatmul.bf16.gmra.mxu0 %v541
        %v2094 = vpop.f32.mrf.mxu0
        %v2095 = vadd.f32 %v2082, %v2094
        %v2096 = vpop.f32.mrf.mxu0
        %2097 = vdwg.mxu0
        %2098 = vmatpush.bf16.msra.mxu0 %v1402
        %2099 = vmatpush.bf16.msra.mxu0 %v1400
        %2100 = vmatpush.bf16.msra.mxu0 %v1398
        %2101 = vmatpush.bf16.msra.mxu0 %v1396
        %2102 = vmatpush.bf16.msra.mxu0 %v1394
        %2103 = vmatpush.bf16.msra.mxu0 %v1392
        %2104 = vmatpush.bf16.msra.mxu0 %v1390
        %2105 = vmatpush.bf16.msra.mxu0 %v1388
        %2106 = vmatmul.bf16.gmra.mxu0 %v542
        %v2107 = vpop.f32.mrf.mxu0
        %v2108 = vadd.f32 %v2095, %v2107
        %v2109 = vpop.f32.mrf.mxu0
        %2110 = vdwg.mxu0
        %2111 = vmatpush.bf16.msra.mxu0 %v1418
        %2112 = vmatpush.bf16.msra.mxu0 %v1416
        %2113 = vmatpush.bf16.msra.mxu0 %v1414
        %2114 = vmatpush.bf16.msra.mxu0 %v1412
        %2115 = vmatpush.bf16.msra.mxu0 %v1410
        %2116 = vmatpush.bf16.msra.mxu0 %v1408
        %2117 = vmatpush.bf16.msra.mxu0 %v1406
        %2118 = vmatpush.bf16.msra.mxu0 %v1404
        %2119 = vmatmul.bf16.gmra.mxu0 %v543
        %v2120 = vpop.f32.mrf.mxu0
        %v2121 = vadd.f32 %v2108, %v2120
        %v2122 = vpop.f32.mrf.mxu0
        %2123 = vdwg.mxu0
        %2124 = vmatpush.bf16.msra.mxu0 %v1434
        %2125 = vmatpush.bf16.msra.mxu0 %v1432
        %2126 = vmatpush.bf16.msra.mxu0 %v1430
        %2127 = vmatpush.bf16.msra.mxu0 %v1428
        %2128 = vmatpush.bf16.msra.mxu0 %v1426
        %2129 = vmatpush.bf16.msra.mxu0 %v1424
        %2130 = vmatpush.bf16.msra.mxu0 %v1422
        %2131 = vmatpush.bf16.msra.mxu0 %v1420
        %2132 = vmatmul.bf16.gmra.mxu0 %v544
        %v2133 = vpop.f32.mrf.mxu0
        %v2134 = vadd.f32 %v2121, %v2133
        %v2135 = vpop.f32.mrf.mxu0
        %2136 = vdwg.mxu0
        %2137 = vmatpush.bf16.msra.mxu0 %v1450
        %2138 = vmatpush.bf16.msra.mxu0 %v1448
        %2139 = vmatpush.bf16.msra.mxu0 %v1446
        %2140 = vmatpush.bf16.msra.mxu0 %v1444
        %2141 = vmatpush.bf16.msra.mxu0 %v1442
        %2142 = vmatpush.bf16.msra.mxu0 %v1440
        %2143 = vmatpush.bf16.msra.mxu0 %v1438
        %2144 = vmatpush.bf16.msra.mxu0 %v1436
        %2145 = vmatmul.bf16.gmra.mxu0 %v545
        %v2146 = vpop.f32.mrf.mxu0
        %v2147 = vadd.f32 %v2134, %v2146
        %v2148 = vpop.f32.mrf.mxu0
        %2149 = vdwg.mxu0
        %2150 = vmatpush.bf16.msra.mxu0 %v1466
        %2151 = vmatpush.bf16.msra.mxu0 %v1464
        %2152 = vmatpush.bf16.msra.mxu0 %v1462
        %2153 = vmatpush.bf16.msra.mxu0 %v1460
        %2154 = vmatpush.bf16.msra.mxu0 %v1458
        %2155 = vmatpush.bf16.msra.mxu0 %v1456
        %2156 = vmatpush.bf16.msra.mxu0 %v1454
        %2157 = vmatpush.bf16.msra.mxu0 %v1452
        %2158 = vmatmul.bf16.gmra.mxu0 %v546
        %v2159 = vpop.f32.mrf.mxu0
        %v2160 = vadd.f32 %v2147, %v2159
        %v2161 = vpop.f32.mrf.mxu0
        %2162 = vdwg.mxu0
        %2163 = vmatpush.bf16.msra.mxu0 %v1482
        %2164 = vmatpush.bf16.msra.mxu0 %v1480
        %2165 = vmatpush.bf16.msra.mxu0 %v1478
        %2166 = vmatpush.bf16.msra.mxu0 %v1476
        %2167 = vmatpush.bf16.msra.mxu0 %v1474
        %2168 = vmatpush.bf16.msra.mxu0 %v1472
        %2169 = vmatpush.bf16.msra.mxu0 %v1470
        %2170 = vmatpush.bf16.msra.mxu0 %v1468
        %2171 = vmatmul.bf16.gmra.mxu0 %v547
        %v2172 = vpop.f32.mrf.mxu0
        %v2173 = vadd.f32 %v2160, %v2172
        %v2174 = vpop.f32.mrf.mxu0
        %2175 = vdwg.mxu0
        %2176 = vmatpush.bf16.msra.mxu0 %v1498
        %2177 = vmatpush.bf16.msra.mxu0 %v1496
        %2178 = vmatpush.bf16.msra.mxu0 %v1494
        %2179 = vmatpush.bf16.msra.mxu0 %v1492
        %2180 = vmatpush.bf16.msra.mxu0 %v1490
        %2181 = vmatpush.bf16.msra.mxu0 %v1488
        %2182 = vmatpush.bf16.msra.mxu0 %v1486
        %2183 = vmatpush.bf16.msra.mxu0 %v1484
        %2184 = vmatmul.bf16.gmra.mxu0 %v548
        %v2185 = vpop.f32.mrf.mxu0
        %v2186 = vadd.f32 %v2173, %v2185
        %v2187 = vpop.f32.mrf.mxu0
        %2188 = vdwg.mxu0
        %2189 = vmatpush.bf16.msra.mxu0 %v1514
        %2190 = vmatpush.bf16.msra.mxu0 %v1512
        %2191 = vmatpush.bf16.msra.mxu0 %v1510
        %2192 = vmatpush.bf16.msra.mxu0 %v1508
        %2193 = vmatpush.bf16.msra.mxu0 %v1506
        %2194 = vmatpush.bf16.msra.mxu0 %v1504
        %2195 = vmatpush.bf16.msra.mxu0 %v1502
        %2196 = vmatpush.bf16.msra.mxu0 %v1500
        %2197 = vmatmul.bf16.gmra.mxu0 %v549
        %v2198 = vpop.f32.mrf.mxu0
        %v2199 = vadd.f32 %v2186, %v2198
        %v2200 = vpop.f32.mrf.mxu0
        %2201 = vdwg.mxu0
        %2202 = vmatpush.bf16.msra.mxu0 %v1530
        %2203 = vmatpush.bf16.msra.mxu0 %v1528
        %2204 = vmatpush.bf16.msra.mxu0 %v1526
        %2205 = vmatpush.bf16.msra.mxu0 %v1524
        %2206 = vmatpush.bf16.msra.mxu0 %v1522
        %2207 = vmatpush.bf16.msra.mxu0 %v1520
        %2208 = vmatpush.bf16.msra.mxu0 %v1518
        %2209 = vmatpush.bf16.msra.mxu0 %v1516
        %2210 = vmatmul.bf16.gmra.mxu0 %v550
        %v2211 = vpop.f32.mrf.mxu0
        %v2212 = vadd.f32 %v2199, %v2211
        %v2213 = vpop.f32.mrf.mxu0
        %2214 = vdwg.mxu0
        %2215 = vmatpush.bf16.msra.mxu0 %v1546
        %2216 = vmatpush.bf16.msra.mxu0 %v1544
        %2217 = vmatpush.bf16.msra.mxu0 %v1542
        %2218 = vmatpush.bf16.msra.mxu0 %v1540
        %2219 = vmatpush.bf16.msra.mxu0 %v1538
        %2220 = vmatpush.bf16.msra.mxu0 %v1536
        %2221 = vmatpush.bf16.msra.mxu0 %v1534
        %2222 = vmatpush.bf16.msra.mxu0 %v1532
        %2223 = vmatmul.bf16.gmra.mxu0 %v551
        %v2224 = vpop.f32.mrf.mxu0
        %v2225 = vadd.f32 %v2212, %v2224
        %v2226 = vpop.f32.mrf.mxu0
        %2227 = vdwg.mxu0
        %2228 = vmatpush.bf16.msra.mxu0 %v1562
        %2229 = vmatpush.bf16.msra.mxu0 %v1560
        %2230 = vmatpush.bf16.msra.mxu0 %v1558
        %2231 = vmatpush.bf16.msra.mxu0 %v1556
        %2232 = vmatpush.bf16.msra.mxu0 %v1554
        %2233 = vmatpush.bf16.msra.mxu0 %v1552
        %2234 = vmatpush.bf16.msra.mxu0 %v1550
        %2235 = vmatpush.bf16.msra.mxu0 %v1548
        %2236 = vmatmul.bf16.gmra.mxu0 %v552
        %v2237 = vpop.f32.mrf.mxu0
        %v2238 = vadd.f32 %v2225, %v2237
        %v2239 = vpop.f32.mrf.mxu0
        %2240 = vdwg.mxu0
        %2241 = vmatpush.bf16.msra.mxu0 %v1578
        %2242 = vmatpush.bf16.msra.mxu0 %v1576
        %2243 = vmatpush.bf16.msra.mxu0 %v1574
        %2244 = vmatpush.bf16.msra.mxu0 %v1572
        %2245 = vmatpush.bf16.msra.mxu0 %v1570
        %2246 = vmatpush.bf16.msra.mxu0 %v1568
        %2247 = vmatpush.bf16.msra.mxu0 %v1566
        %2248 = vmatpush.bf16.msra.mxu0 %v1564
        %2249 = vmatmul.bf16.gmra.mxu0 %v553
        %v2250 = vpop.f32.mrf.mxu0
        %v2251 = vadd.f32 %v2238, %v2250
        %v2252 = vpop.f32.mrf.mxu0
        %2253 = vdwg.mxu0
        %2254 = vmatpush.bf16.msra.mxu0 %v1594
        %2255 = vmatpush.bf16.msra.mxu0 %v1592
        %2256 = vmatpush.bf16.msra.mxu0 %v1590
        %2257 = vmatpush.bf16.msra.mxu0 %v1588
        %2258 = vmatpush.bf16.msra.mxu0 %v1586
        %2259 = vmatpush.bf16.msra.mxu0 %v1584
        %2260 = vmatpush.bf16.msra.mxu0 %v1582
        %2261 = vmatpush.bf16.msra.mxu0 %v1580
        %2262 = vmatmul.bf16.gmra.mxu0 %v554
        %v2263 = vpop.f32.mrf.mxu0
        %v2264 = vadd.f32 %v2251, %v2263
        %v2265 = vpop.f32.mrf.mxu0
        %2266 = vdwg.mxu0
        %v2267 = vmax.f32 %v2056, 0.0
        %v2268 = vmax.f32 %v2264, 0.0
        %2269 = vst [vmem:[%s241] sm:$0xff] %v2267
        %2270 = vst [vmem:[%s241 + $0x8] sm:$0xff] %v2268
        %s2271 = sand.u32 %s102, 1
        %s2272 = scalar_lea.sflag [#allocation4], %s2271
        %s2273 = sand.u32 %s102, 1
        %s2274 = smul.addr %s2273, 16
        %s2275 = scalar_lea.vmem [#allocation8], %s2274
        // Predicated region
        $region45: #{tpu_custom_call.1} parent=31 // pred_check
          %p2276 = pneg %p112
        $region46: #{tpu_custom_call.1} parent=31 // pred_check_branch
          %2278 = sbr.rel (%p2276) target = $region48
        $region47: #{tpu_custom_call.1} parent=31 // pred_region
          %s2279 = smul.u32 2, %s21
          %2281 = vsyncadd %s2272, 0
          %s2282 = smul.addr %s2279, 8
          %s2283 = scalar_lea.hbm %s3, %s2282
          %s2285 = sshll.u32 %s2275, 4
          %s2286 = int_to_ptr.vmem [resolvable:$true] %s2285
          %s2287 = sshll.u32 %s2283, 4
          %s2288 = int_to_ptr.hbm [resolvable:$true] %s2287
          %2290 = dma.vmem_to_hbm [thread:$0]  %s2286, 256, %s2288, %s2272
        $region48: #{tpu_custom_call.1} parent=31 // pred_fallthru
          _
      $region32: #{tpu_custom_call.1} parent=5 // pred_fallthru
        _
      %p2291 = scmp.le.s32.totalorder 2, %s16
      // Predicated region
      $region49: #{tpu_custom_call.1} parent=5 // pred_check
        %p2292 = pneg %p2291
      $region50: #{tpu_custom_call.1} parent=5 // pred_check_branch
        %2294 = sbr.rel (%p2292) target = $region52
      $region51: #{tpu_custom_call.1} parent=5 // pred_region
        %s2295 = ssub.s32 %s16, 2
        // Predicated region
        $region53: #{tpu_custom_call.1} parent=51 // pred_check
          %p2296 = pneg %p118
        $region54: #{tpu_custom_call.1} parent=51 // pred_check_branch
          %2298 = sbr.rel (%p2296) target = $region56
        $region55: #{tpu_custom_call.1} parent=51 // pred_region
          %s2299 = sand.u32 %s103, 1
          %s2300 = scalar_lea.sflag [#allocation4], %s2299
          %s2301 = sand.u32 %s103, 1
          %s2302 = smul.addr %s2301, 16
          %s2303 = scalar_lea.vmem [#allocation8], %s2302
          %2305 = dma.done %s2300, 256
        $region56: #{tpu_custom_call.1} parent=51 // pred_fallthru
          _
      $region52: #{tpu_custom_call.1} parent=5 // pred_fallthru
        _
    $region6: #{tpu_custom_call.1} parent=1 // loop_footer
      %s20 = sadd.s32 1, %s16
    $region7: #{tpu_custom_call.1} parent=1 // loop_footer_branch
      %15 = sbr.rel target = $region3
    $region8: #{tpu_custom_call.1} parent=1 // loop_exit
      _
    %2306 = vsyncpa [#allocation3], 1
    %s2307 = scalar_lea.sflag [#allocation3], 1
    %2308 = vsyncpa %s2307, 1
    %2309 = vsyncpa [#allocation6], 1
    %s2310 = scalar_lea.sflag [#allocation6], 1
    %2311 = vsyncpa %s2310, 1
    %2312 = vsyncpa [#allocation4], 1
    %s2313 = scalar_lea.sflag [#allocation4], 1
    %2314 = vsyncpa %s2313, 1

</llo_original>
